<compile_context>
chip_gen: v7x
topology: tpu7x:2x2x1
jax: 0.10.0
libtpu: 0.0.40
codegen_flags: <defaults>
</compile_context>

<pallas_src>
import functools

import jax
import jax.numpy as jnp
from jax import lax
from jax.experimental import pallas as pl
from jax.experimental.pallas import tpu as pltpu

EPS = 1e-5  # torch.nn.LayerNorm default


def _layernorm(x, gamma, beta):
    # x: (..., D), gamma/beta broadcastable to (..., D)
    mu = jnp.mean(x, axis=-1, keepdims=True)
    var = jnp.mean((x - mu) ** 2, axis=-1, keepdims=True)
    return (x - mu) * lax.rsqrt(var + EPS) * gamma + beta


# ----------------------------------------------------------------------------
# Fused kernel: all depth layers (cross-attn + FF) + projector + final norm.
# Grid = (batch_blocks, depth); latents live in VMEM scratch across depth.
# ----------------------------------------------------------------------------
def _fused_resampler_kernel(
        x_ref, bias_ref, lat0_ref,
        wq_ref, wkv_ref, wout_ref,
        ln_ref, w1_ref, w2_ref,
        pw_ref, fin_ref,
        o_ref,
        lat_sc, kv_sc, attn_sc,
        *, heads, dim_head):
    layer = pl.program_id(1)
    n_layers = pl.num_programs(1)

    bb, n1, D = x_ref.shape
    _, n2, _ = lat_sc.shape
    nk = n1 + n2
    inner = heads * dim_head
    m_lat = bb * n2          # MXU rows for latent-side matmuls
    m_kv = bb * nk           # MXU rows for key/value-side matmuls

    # ---- initialize resident latents on the first depth step ----
    @pl.when(layer == 0)
    def _():
        lat_sc[...] = jnp.broadcast_to(lat0_ref[...][None], (bb, n2, D))

    # per-layer LayerNorm params, packed (6, D): gm_g, gm_b, gl_g, gl_b, ff_g, ff_b
    lnp = ln_ref[0]
    gm_g, gm_b = lnp[0], lnp[1]
    gl_g, gl_b = lnp[2], lnp[3]
    ff_g, ff_b = lnp[4], lnp[5]

    # ======================= cross attention =======================
    lat = lat_sc[...]                                              # residual source (f32)
    xn = _layernorm(x_ref[...].astype(jnp.float32), gm_g, gm_b)    # norm_media (stats in f32)
    ln = _layernorm(lat, gl_g, gl_b)                               # norm_latents

    # kv input = cat(norm(x), norm(latents)); staged into a contiguous bf16
    # VMEM scratch with two static slice stores (no concat, half the bytes).
    kv_sc[:, :n1, :] = xn.astype(jnp.bfloat16)
    kv_sc[:, n1:, :] = ln.astype(jnp.bfloat16)

    ln2 = ln.reshape(m_lat, D).astype(jnp.bfloat16)
    kv2 = kv_sc[...].reshape(m_kv, D)                              # already bf16

    # Full-width projections: one wide matmul for Q, one fused matmul for K/V.
    q_full = jnp.dot(ln2, wq_ref[0], preferred_element_type=jnp.float32)     # (m_lat, inner), scale folded
    kv_full = jnp.dot(kv2, wkv_ref[0], preferred_element_type=jnp.float32)   # (m_kv, 2*inner)

    q3 = q_full.reshape(bb, n2, inner).astype(jnp.bfloat16)
    k3 = kv_full[:, :inner].reshape(bb, nk, inner).astype(jnp.bfloat16)
    v3 = kv_full[:, inner:].reshape(bb, nk, inner).astype(jnp.bfloat16)

    bias = bias_ref[...][:, None, :]                               # (bb, 1, nk) additive mask

    # per-head softmax (static unroll, static lane slices; head outputs go
    # straight to a bf16 VMEM scratch -> no carried accumulator).
    for h in range(heads):
        sl = slice(h * dim_head, (h + 1) * dim_head)
        qh, kh, vh = q3[:, :, sl], k3[:, :, sl], v3[:, :, sl]
        sim = jnp.einsum('bid,bjd->bij', qh, kh,
                         preferred_element_type=jnp.float32) + bias          # (bb, n2, nk)
        m = jnp.max(sim, axis=-1, keepdims=True)                   # post-mask max: safe & shift-invariant
        e = jnp.exp(sim - m)
        p = e * pl.reciprocal(jnp.sum(e, axis=-1, keepdims=True), approx=True)
        oh = jnp.einsum('bij,bjd->bid', p.astype(jnp.bfloat16), vh,
                        preferred_element_type=jnp.float32)                  # (bb, n2, dh)
        attn_sc[:, :, sl] = oh.astype(jnp.bfloat16)

    # single wide out-projection (K = inner)
    attn_out = jnp.dot(attn_sc[...].reshape(m_lat, inner), wout_ref[0],
                       preferred_element_type=jnp.float32)
    lat = lat + attn_out.reshape(bb, n2, D)                        # attn residual

    # ========================= feed forward =========================
    fn = _layernorm(lat, ff_g, ff_b).reshape(m_lat, D).astype(jnp.bfloat16)
    hmid = jnp.dot(fn, w1_ref[0], preferred_element_type=jnp.float32)
    hmid = 0.5 * hmid * (1.0 + lax.erf(hmid * 0.7071067811865476))  # exact GELU
    y = jnp.dot(hmid.astype(jnp.bfloat16), w2_ref[0],
                preferred_element_type=jnp.float32)
    lat = lat + y.reshape(bb, n2, D)                               # FF residual
    lat_sc[...] = lat

    # ============== projector + final LayerNorm (last step) ==============
    @pl.when(layer == n_layers - 1)
    def _():
        out_d = pw_ref.shape[1]
        t = jnp.dot(lat.reshape(m_lat, D).astype(jnp.bfloat16), pw_ref[...],
                    preferred_element_type=jnp.float32) + fin_ref[0]
        t = _layernorm(t, fin_ref[1], fin_ref[2])
        o_ref[...] = t.reshape(bb, n2, out_d)


# ----------------------------------------------------------------------------
# Wrapper
# ----------------------------------------------------------------------------
def resampler_forward(embeds, mask, packed, *, heads, dim_head,
                      batch_block=None, vmem_limit_bytes=None):
    B, n1, D = embeds.shape
    lat0 = packed["latents"]
    n2 = lat0.shape[0]
    nk = n1 + n2
    depth = packed["wq"].shape[0]
    inner = packed["wq"].shape[2]
    assert inner == heads * dim_head
    ff_inner = packed["w1"].shape[2]
    out_d = packed["proj_w"].shape[1]

    # Default: nb = 1 so per-layer weights are DMA'd exactly once per layer
    # (v5e/v6e single TC).  On v7x pass batch_block = B // 2 for megacore.
    if batch_block is None:
        batch_block = B
    assert B % batch_block == 0, "batch must be divisible by batch_block"
    nb = B // batch_block

    # Stream embeds as bf16 (largest input); LN stats are computed in f32 in-kernel.
    embeds_bf16 = embeds.astype(jnp.bfloat16)

    # Additive attention-mask bias, precomputed once (latent keys never masked).
    mask_bias = jnp.concatenate(
        [jnp.where(mask.astype(jnp.float32) > 0, 0.0, -10000.0).astype(jnp.float32),
         jnp.zeros((B, n2), jnp.float32)], axis=1)

    if vmem_limit_bytes is None:
        # Conservative working-set estimate; never lowers below the 32 MiB
        # scoped default so small shapes behave exactly like the default.
        w_bytes = 2 * (D * inner + D * 2 * inner + inner * D
                       + D * ff_inner + ff_inner * D) + 4 * 6 * D
        io_bytes = (2 * batch_block * n1 * D + 4 * batch_block * nk
                    + 4 * n2 * D + 2 * D * out_d + 4 * 3 * out_d
                    + 4 * batch_block * n2 * out_d)
        scratch_bytes = (4 * batch_block * n2 * D + 2 * batch_block * nk * D
                         + 2 * batch_block * n2 * inner)
        interm_bytes = 4 * batch_block * (n2 * ff_inner + nk * 2 * inner + n2 * inner)
        est = 2 * (w_bytes + io_bytes) + scratch_bytes + 2 * interm_bytes
        # NOTE: cap leaves headroom on v6e (128 MiB); on v7x (64 MiB) pass an
        # explicit limit if the estimate exceeds it.
        vmem_limit_bytes = int(min(max(est, 32 * 1024 * 1024), 110 * 1024 * 1024))

    kernel = functools.partial(_fused_resampler_kernel, heads=heads, dim_head=dim_head)

    def rep(shape):        # replicated (constant block index) operand
        return pl.BlockSpec(shape, lambda b, l: (0,) * len(shape))

    def per_layer(shape):  # per-layer operand, stacked along a leading depth dim
        return pl.BlockSpec(shape, lambda b, l: (l,) + (0,) * (len(shape) - 1))

    in_specs = [
        pl.BlockSpec((batch_block, n1, D), lambda b, l: (b, 0, 0)),  # embeds (bf16)
        pl.BlockSpec((batch_block, nk), lambda b, l: (b, 0)),        # mask bias
        rep((n2, D)),                                                # latent init
        per_layer((1, D, inner)),                                    # wq (scale folded)
        per_layer((1, D, 2 * inner)),                                # wkv (fused K/V)
        per_layer((1, inner, D)),                                    # wout
        per_layer((1, 6, D)),                                        # packed LN params
        per_layer((1, D, ff_inner)),                                 # w1
        per_layer((1, ff_inner, D)),                                 # w2
        rep((D, out_d)),                                             # proj_w
        rep((3, out_d)),                                             # proj_b, norm_g, norm_b
    ]

    return pl.pallas_call(
        kernel,
        out_shape=jax.ShapeDtypeStruct((B, n2, out_d), jnp.float32),
        grid=(nb, depth),
        in_specs=in_specs,
        out_specs=pl.BlockSpec((batch_block, n2, out_d), lambda b, l: (b, 0, 0)),
        scratch_shapes=[
            pltpu.VMEM((batch_block, n2, D), jnp.float32),      # resident latents
            pltpu.VMEM((batch_block, nk, D), jnp.bfloat16),     # staged kv input (bf16)
            pltpu.VMEM((batch_block, n2, inner), jnp.bfloat16)  # per-head attn outputs
        ],
        compiler_params=pltpu.CompilerParams(
            dimension_semantics=("parallel", "arbitrary"),
            vmem_limit_bytes=vmem_limit_bytes),
    )(embeds_bf16, mask_bias, lat0,
      packed["wq"], packed["wkv"], packed["wout"],
      packed["ln"], packed["w1"], packed["w2"],
      packed["proj_w"], packed["fin"])


# ----------------------------------------------------------------------------
# Parameter init (torch-style layout, f32) and packing for the kernel
# ----------------------------------------------------------------------------
def init_params(key, *, D, out_dim, depth, heads, dim_head, num_latents, ff_mult):
    inner = heads * dim_head
    ff_inner = int(D * ff_mult)

    def nrm(k, shape, scale=0.02):
        return (scale * jax.random.normal(k, shape)).astype(jnp.float32)

    keys = iter(jax.random.split(key, 1 + depth * 5 + 2))
    params = {"latents": jax.random.normal(next(keys), (num_latents, D), dtype=jnp.float32)}
    layers = []
    for _ in range(depth):
        attn = {
            "gm_g": jnp.ones((1, D), jnp.float32), "gm_b": jnp.zeros((1, D), jnp.float32),
            "gl_g": jnp.ones((1, D), jnp.float32), "gl_b": jnp.zeros((1, D), jnp.float32),
            "wq": nrm(next(keys), (D, inner)),
            "wkv": nrm(next(keys), (D, 2 * inner)),
            "wout": nrm(next(keys), (inner, D)),
        }
        ff = {"g": jnp.ones((1, D), jnp.float32), "b": jnp.zeros((1, D), jnp.float32),
              "w1": nrm(next(keys), (D, ff_inner)),
              "w2": nrm(next(keys), (ff_inner, D))}
        layers.append({"attn": attn, "ff": ff})
    params["layers"] = layers
    params["proj_w"] = nrm(next(keys), (D, out_dim))
    params["proj_b"] = nrm(next(keys), (1, out_dim))
    params["norm_g"] = jnp.ones((1, out_dim), jnp.float32)
    params["norm_b"] = jnp.zeros((1, out_dim), jnp.float32)
    return params


def pack_params(raw, *, heads, dim_head, matmul_dtype=jnp.bfloat16):
    """Stack per-layer weights along depth, fold attn scale into wq, cast bf16.

    Q/K/V weights stay full-width (no per-head split) so the kernel issues
    single wide MXU matmuls; LayerNorm vectors are packed into one (depth,6,D)
    tensor and the projector bias + final-norm params into one (3, out_d).
    """
    scale = dim_head ** (-0.5)

    def stack(fn):
        return jnp.stack([fn(L) for L in raw["layers"]], axis=0)

    return {
        "latents": raw["latents"].astype(jnp.float32),
        "wq": stack(lambda L: L["attn"]["wq"] * scale).astype(matmul_dtype),   # (depth, D, inner)
        "wkv": stack(lambda L: L["attn"]["wkv"]).astype(matmul_dtype),          # (depth, D, 2*inner)
        "wout": stack(lambda L: L["attn"]["wout"]).astype(matmul_dtype),        # (depth, inner, D)
        "ln": stack(lambda L: jnp.concatenate(
            [L["attn"]["gm_g"], L["attn"]["gm_b"],
             L["attn"]["gl_g"], L["attn"]["gl_b"],
             L["ff"]["g"], L["ff"]["b"]], axis=0)).astype(jnp.float32),         # (depth, 6, D)
        "w1": stack(lambda L: L["ff"]["w1"]).astype(matmul_dtype),
        "w2": stack(lambda L: L["ff"]["w2"]).astype(matmul_dtype),
        "proj_w": raw["proj_w"].astype(matmul_dtype),
        "fin": jnp.concatenate([raw["proj_b"], raw["norm_g"], raw["norm_b"]],
                               axis=0).astype(jnp.float32),                     # (3, out_d)
    }


# ----------------------------------------------------------------------------
# Pure-JAX f32 reference (mirrors the PyTorch module) for a sanity check
# ----------------------------------------------------------------------------
def reference_forward(embeds, mask, raw, *, heads, dim_head):
    b, n1, D = embeds.shape
    lat0 = raw["latents"]
    n2 = lat0.shape[0]
    inner = heads * dim_head
    scale = dim_head ** (-0.5)
    full_mask = jnp.concatenate(
        [mask.astype(jnp.float32), jnp.ones((b, n2), jnp.float32)], axis=1)
    latents = jnp.broadcast_to(lat0[None], (b, n2, D))
    for L in raw["layers"]:
        a, f = L["attn"], L["ff"]
        xn = _layernorm(embeds, a["gm_g"], a["gm_b"])
        ln = _layernorm(latents, a["gl_g"], a["gl_b"])
        q = (ln @ a["wq"]) * scale
        kv = jnp.concatenate([xn, ln], axis=1) @ a["wkv"]
        k, v = kv[..., :inner], kv[..., inner:]

        def split(t):
            return t.reshape(t.shape[0], t.shape[1], heads, dim_head).transpose(0, 2, 1, 3)

        qh, kh, vh = split(q), split(k), split(v)
        sim = jnp.einsum('bhid,bhjd->bhij', qh, kh)
        sim = sim - jnp.max(sim, axis=-1, keepdims=True)
        sim = jnp.where(full_mask[:, None, None, :] > 0, sim, -10000.0)
        attn = jax.nn.softmax(sim, axis=-1)
        out = jnp.einsum('bhij,bhjd->bhid', attn, vh)
        out = out.transpose(0, 2, 1, 3).reshape(b, n2, inner)
        latents = out @ a["wout"] + latents

        fn = _layernorm(latents, f["g"], f["b"])
        hmid = fn @ f["w1"]
        hmid = 0.5 * hmid * (1.0 + lax.erf(hmid * 0.7071067811865476))
        latents = hmid @ f["w2"] + latents
    t = latents @ raw["proj_w"] + raw["proj_b"]
    return _layernorm(t, raw["norm_g"], raw["norm_b"])


if __name__ == "__main__":
    # small shapes consistent with the module's forward
    B, N1, D = 2, 8, 32          # batch, protein seq len, protein_repr_dim
    OUT_D = 32                   # output_repr_dim
    HEADS, DIM_HEAD = 4, 16
    NUM_LATENTS = 8
    DEPTH = 2
    FF_MULT = 4

    key = jax.random.PRNGKey(0)
    k_emb, k_mask, k_par = jax.random.split(key, 3)

    embeds = jax.random.normal(k_emb, (B, N1, D), dtype=jnp.float32)
    mask = (jax.random.uniform(k_mask, (B, N1)) > 0.3).astype(jnp.float32)

    raw = init_params(k_par, D=D, out_dim=OUT_D, depth=DEPTH, heads=HEADS,
                      dim_head=DIM_HEAD, num_latents=NUM_LATENTS, ff_mult=FF_MULT)
    packed = pack_params(raw, heads=HEADS, dim_head=DIM_HEAD)

    fwd = jax.jit(functools.partial(resampler_forward, heads=HEADS,
                                    dim_head=DIM_HEAD, batch_block=B))
    out = jax.block_until_ready(fwd(embeds, mask, packed))

    assert out.shape == (B, NUM_LATENTS, OUT_D)
    assert bool(jnp.all(jnp.isfinite(out)))

    # loose tolerance: kernel uses bf16 MXU operands / bf16 embeds, reference is pure f32
    ref = reference_forward(embeds, mask, raw, heads=HEADS, dim_head=DIM_HEAD)
    err = float(jnp.max(jnp.abs(out - ref)))
    assert err < 0.1, f"mismatch vs reference: {err}"

    print("KERNEL_OK")
</pallas_src>

<mosaic_0001>
module attributes {stable_mosaic.version = 11 : i64} {
  func.func @_fused_resampler_kernel(%arg0: i32, %arg1: i32, %arg2: memref<2x8x32xbf16, #tpu.memory_space<vmem>>, %arg3: memref<2x16xf32, #tpu.memory_space<vmem>>, %arg4: memref<8x32xf32, #tpu.memory_space<vmem>>, %arg5: memref<1x32x64xbf16, #tpu.memory_space<vmem>>, %arg6: memref<1x32x128xbf16, #tpu.memory_space<vmem>>, %arg7: memref<1x64x32xbf16, #tpu.memory_space<vmem>>, %arg8: memref<1x6x32xf32, #tpu.memory_space<vmem>>, %arg9: memref<1x32x128xbf16, #tpu.memory_space<vmem>>, %arg10: memref<1x128x32xbf16, #tpu.memory_space<vmem>>, %arg11: memref<32x32xbf16, #tpu.memory_space<vmem>>, %arg12: memref<3x32xf32, #tpu.memory_space<vmem>>, %arg13: memref<2x8x32xf32, #tpu.memory_space<vmem>>, %arg14: memref<2x8x32xf32, #tpu.memory_space<vmem>>, %arg15: memref<2x16x32xbf16, #tpu.memory_space<vmem>>, %arg16: memref<2x8x64xbf16, #tpu.memory_space<vmem>>) attributes {dimension_semantics = [#tpu.dimension_semantics<parallel>, #tpu.dimension_semantics<arbitrary>], iteration_bounds = array<i64: 1, 2>, scalar_prefetch = 0 : i64, scratch_operands = 3 : i64, tpu.core_type = #tpu.core_type<tc>, window_params = [{transform_indices = @transform_0, window_bounds = array<i64: 2, 8, 32>}, {transform_indices = @transform_1, window_bounds = array<i64: 2, 16>}, {pipeline_mode = #tpu.pipeline_mode<synchronous>, transform_indices = @transform_2, window_bounds = array<i64: 8, 32>}, {transform_indices = @transform_3, window_bounds = array<i64: 1, 32, 64>}, {transform_indices = @transform_4, window_bounds = array<i64: 1, 32, 128>}, {transform_indices = @transform_5, window_bounds = array<i64: 1, 64, 32>}, {transform_indices = @transform_6, window_bounds = array<i64: 1, 6, 32>}, {transform_indices = @transform_7, window_bounds = array<i64: 1, 32, 128>}, {transform_indices = @transform_8, window_bounds = array<i64: 1, 128, 32>}, {pipeline_mode = #tpu.pipeline_mode<synchronous>, transform_indices = @transform_9, window_bounds = array<i64: 32, 32>}, {pipeline_mode = #tpu.pipeline_mode<synchronous>, transform_indices = @transform_10, window_bounds = array<i64: 3, 32>}, {transform_indices = @transform_11, window_bounds = array<i64: 2, 8, 32>}]} {
    %c0_i32 = arith.constant 0 : i32
    %0 = arith.cmpi eq, %arg1, %c0_i32 : i32
    %1 = arith.extui %0 : i1 to i32
    %c0_i32_0 = arith.constant 0 : i32
    %2 = arith.cmpi ne, %1, %c0_i32_0 : i32
    scf.if %2 {
      %c0_88 = arith.constant 0 : index
      %c0_89 = arith.constant 0 : index
      %226 = vector.load %arg4[%c0_88, %c0_89] : memref<8x32xf32, #tpu.memory_space<vmem>>, vector<8x32xf32>
      %227 = vector.shape_cast %226 : vector<8x32xf32> to vector<1x8x32xf32>
      %228 = vector.shape_cast %227 : vector<1x8x32xf32> to vector<1x8x32xf32>
      %229 = vector.broadcast %228 : vector<1x8x32xf32> to vector<2x8x32xf32>
      %c0_90 = arith.constant 0 : index
      %c0_91 = arith.constant 0 : index
      %c0_92 = arith.constant 0 : index
      %230 = vector.load %arg14[%c0_90, %c0_91, %c0_92] : memref<2x8x32xf32, #tpu.memory_space<vmem>>, vector<2x8x32xf32>
      tpu.vector_store %arg14[%c0_90, %c0_91, %c0_92], %229 {strides = array<i32>} : memref<2x8x32xf32, #tpu.memory_space<vmem>>, vector<2x8x32xf32>,
    } else {
    }
    %c0 = arith.constant 0 : index
    %c0_1 = arith.constant 0 : index
    %c0_2 = arith.constant 0 : index
    %3 = vector.load %arg8[%c0, %c0_1, %c0_2] : memref<1x6x32xf32, #tpu.memory_space<vmem>>, vector<1x6x32xf32>
    %4 = vector.shape_cast %3 : vector<1x6x32xf32> to vector<6x32xf32>
    %5 = vector.extract_strided_slice %4 {offsets = [0, 0], sizes = [1, 32], strides = [1, 1]} : vector<6x32xf32> to vector<1x32xf32>
    %6 = vector.shape_cast %5 : vector<1x32xf32> to vector<32xf32>
    %7 = vector.extract_strided_slice %4 {offsets = [1, 0], sizes = [1, 32], strides = [1, 1]} : vector<6x32xf32> to vector<1x32xf32>
    %8 = vector.shape_cast %7 : vector<1x32xf32> to vector<32xf32>
    %9 = vector.extract_strided_slice %4 {offsets = [2, 0], sizes = [1, 32], strides = [1, 1]} : vector<6x32xf32> to vector<1x32xf32>
    %10 = vector.shape_cast %9 : vector<1x32xf32> to vector<32xf32>
    %11 = vector.extract_strided_slice %4 {offsets = [3, 0], sizes = [1, 32], strides = [1, 1]} : vector<6x32xf32> to vector<1x32xf32>
    %12 = vector.shape_cast %11 : vector<1x32xf32> to vector<32xf32>
    %13 = vector.extract_strided_slice %4 {offsets = [4, 0], sizes = [1, 32], strides = [1, 1]} : vector<6x32xf32> to vector<1x32xf32>
    %14 = vector.shape_cast %13 : vector<1x32xf32> to vector<32xf32>
    %15 = vector.extract_strided_slice %4 {offsets = [5, 0], sizes = [1, 32], strides = [1, 1]} : vector<6x32xf32> to vector<1x32xf32>
    %16 = vector.shape_cast %15 : vector<1x32xf32> to vector<32xf32>
    %c0_3 = arith.constant 0 : index
    %c0_4 = arith.constant 0 : index
    %c0_5 = arith.constant 0 : index
    %17 = vector.load %arg14[%c0_3, %c0_4, %c0_5] : memref<2x8x32xf32, #tpu.memory_space<vmem>>, vector<2x8x32xf32>
    %c0_6 = arith.constant 0 : index
    %c0_7 = arith.constant 0 : index
    %c0_8 = arith.constant 0 : index
    %18 = vector.load %arg2[%c0_6, %c0_7, %c0_8] : memref<2x8x32xbf16, #tpu.memory_space<vmem>>, vector<2x8x32xbf16>
    %19 = arith.extf %18 : vector<2x8x32xbf16> to vector<2x8x32xf32>
    %cst = arith.constant dense<0.000000e+00> : vector<2x8xf32>
    %20 = vector.multi_reduction <add>, %19, %cst [2] : vector<2x8x32xf32> to vector<2x8xf32>
    %21 = vector.shape_cast %20 : vector<2x8xf32> to vector<2x8x1xf32>
    %cst_9 = arith.constant 3.200000e+01 : f32
    %22 = vector.broadcast %cst_9 : f32 to vector<2x8x1xf32>
    %23 = arith.divf %21, %22 : vector<2x8x1xf32>
    %24 = vector.broadcast %23 : vector<2x8x1xf32> to vector<2x8x32xf32>
    %25 = arith.subf %19, %24 : vector<2x8x32xf32>
    %26 = arith.mulf %25, %25 : vector<2x8x32xf32>
    %cst_10 = arith.constant dense<0.000000e+00> : vector<2x8xf32>
    %27 = vector.multi_reduction <add>, %26, %cst_10 [2] : vector<2x8x32xf32> to vector<2x8xf32>
    %28 = vector.shape_cast %27 : vector<2x8xf32> to vector<2x8x1xf32>
    %cst_11 = arith.constant 3.200000e+01 : f32
    %29 = vector.broadcast %cst_11 : f32 to vector<2x8x1xf32>
    %30 = arith.divf %28, %29 : vector<2x8x1xf32>
    %31 = vector.broadcast %23 : vector<2x8x1xf32> to vector<2x8x32xf32>
    %32 = arith.subf %19, %31 : vector<2x8x32xf32>
    %cst_12 = arith.constant 9.99999974E-6 : f32
    %33 = vector.broadcast %cst_12 : f32 to vector<2x8x1xf32>
    %34 = arith.addf %30, %33 : vector<2x8x1xf32>
    %35 = math.rsqrt %34 : vector<2x8x1xf32>
    %36 = vector.broadcast %35 : vector<2x8x1xf32> to vector<2x8x32xf32>
    %37 = arith.mulf %32, %36 : vector<2x8x32xf32>
    %38 = vector.shape_cast %6 : vector<32xf32> to vector<1x1x32xf32>
    %39 = vector.broadcast %38 : vector<1x1x32xf32> to vector<2x8x32xf32>
    %40 = arith.mulf %37, %39 : vector<2x8x32xf32>
    %41 = vector.shape_cast %8 : vector<32xf32> to vector<1x1x32xf32>
    %42 = vector.broadcast %41 : vector<1x1x32xf32> to vector<2x8x32xf32>
    %43 = arith.addf %40, %42 : vector<2x8x32xf32>
    %cst_13 = arith.constant dense<0.000000e+00> : vector<2x8xf32>
    %44 = vector.multi_reduction <add>, %17, %cst_13 [2] : vector<2x8x32xf32> to vector<2x8xf32>
    %45 = vector.shape_cast %44 : vector<2x8xf32> to vector<2x8x1xf32>
    %cst_14 = arith.constant 3.200000e+01 : f32
    %46 = vector.broadcast %cst_14 : f32 to vector<2x8x1xf32>
    %47 = arith.divf %45, %46 : vector<2x8x1xf32>
    %48 = vector.broadcast %47 : vector<2x8x1xf32> to vector<2x8x32xf32>
    %49 = arith.subf %17, %48 : vector<2x8x32xf32>
    %50 = arith.mulf %49, %49 : vector<2x8x32xf32>
    %cst_15 = arith.constant dense<0.000000e+00> : vector<2x8xf32>
    %51 = vector.multi_reduction <add>, %50, %cst_15 [2] : vector<2x8x32xf32> to vector<2x8xf32>
    %52 = vector.shape_cast %51 : vector<2x8xf32> to vector<2x8x1xf32>
    %cst_16 = arith.constant 3.200000e+01 : f32
    %53 = vector.broadcast %cst_16 : f32 to vector<2x8x1xf32>
    %54 = arith.divf %52, %53 : vector<2x8x1xf32>
    %55 = vector.broadcast %47 : vector<2x8x1xf32> to vector<2x8x32xf32>
    %56 = arith.subf %17, %55 : vector<2x8x32xf32>
    %cst_17 = arith.constant 9.99999974E-6 : f32
    %57 = vector.broadcast %cst_17 : f32 to vector<2x8x1xf32>
    %58 = arith.addf %54, %57 : vector<2x8x1xf32>
    %59 = math.rsqrt %58 : vector<2x8x1xf32>
    %60 = vector.broadcast %59 : vector<2x8x1xf32> to vector<2x8x32xf32>
    %61 = arith.mulf %56, %60 : vector<2x8x32xf32>
    %62 = vector.shape_cast %10 : vector<32xf32> to vector<1x1x32xf32>
    %63 = vector.broadcast %62 : vector<1x1x32xf32> to vector<2x8x32xf32>
    %64 = arith.mulf %61, %63 : vector<2x8x32xf32>
    %65 = vector.shape_cast %12 : vector<32xf32> to vector<1x1x32xf32>
    %66 = vector.broadcast %65 : vector<1x1x32xf32> to vector<2x8x32xf32>
    %67 = arith.addf %64, %66 : vector<2x8x32xf32>
    %68 = arith.truncf %43 : vector<2x8x32xf32> to vector<2x8x32xbf16>
    %c0_18 = arith.constant 0 : index
    %c0_19 = arith.constant 0 : index
    %c0_20 = arith.constant 0 : index
    %69 = vector.load %arg15[%c0_18, %c0_19, %c0_20] : memref<2x16x32xbf16, #tpu.memory_space<vmem>>, vector<2x8x32xbf16>
    tpu.vector_store %arg15[%c0_18, %c0_19, %c0_20], %68 {strides = array<i32>} : memref<2x16x32xbf16, #tpu.memory_space<vmem>>, vector<2x8x32xbf16>,
    %70 = arith.truncf %67 : vector<2x8x32xf32> to vector<2x8x32xbf16>
    %c0_21 = arith.constant 0 : index
    %c8 = arith.constant 8 : index
    %c0_22 = arith.constant 0 : index
    %71 = vector.load %arg15[%c0_21, %c8, %c0_22] : memref<2x16x32xbf16, #tpu.memory_space<vmem>>, vector<2x8x32xbf16>
    tpu.vector_store %arg15[%c0_21, %c8, %c0_22], %70 {strides = array<i32>} : memref<2x16x32xbf16, #tpu.memory_space<vmem>>, vector<2x8x32xbf16>,
    %72 = vector.shape_cast %67 : vector<2x8x32xf32> to vector<16x32xf32>
    %73 = arith.truncf %72 : vector<16x32xf32> to vector<16x32xbf16>
    %c0_23 = arith.constant 0 : index
    %c0_24 = arith.constant 0 : index
    %c0_25 = arith.constant 0 : index
    %74 = vector.load %arg15[%c0_23, %c0_24, %c0_25] : memref<2x16x32xbf16, #tpu.memory_space<vmem>>, vector<2x16x32xbf16>
    %75 = vector.shape_cast %74 : vector<2x16x32xbf16> to vector<32x32xbf16>
    %c0_26 = arith.constant 0 : index
    %c0_27 = arith.constant 0 : index
    %c0_28 = arith.constant 0 : index
    %76 = vector.load %arg5[%c0_26, %c0_27, %c0_28] : memref<1x32x64xbf16, #tpu.memory_space<vmem>>, vector<1x32x64xbf16>
    %77 = vector.shape_cast %76 : vector<1x32x64xbf16> to vector<32x64xbf16>
    %cst_29 = arith.constant dense<0.000000e+00> : vector<16x64xf32>
    %78 = tpu.matmul %73, %77, %cst_29 {dimension_numbers = #tpu.dot_dimension_numbers<[1], [0], [0], [1], [0, 0, 1, 1], [], []>} : vector<16x32xbf16>, vector<32x64xbf16>, vector<16x64xf32> -> vector<16x64xf32>
    %c0_30 = arith.constant 0 : index
    %c0_31 = arith.constant 0 : index
    %c0_32 = arith.constant 0 : index
    %79 = vector.load %arg6[%c0_30, %c0_31, %c0_32] : memref<1x32x128xbf16, #tpu.memory_space<vmem>>, vector<1x32x128xbf16>
    %80 = vector.shape_cast %79 : vector<1x32x128xbf16> to vector<32x128xbf16>
    %cst_33 = arith.constant dense<0.000000e+00> : vector<32x128xf32>
    %81 = tpu.matmul %75, %80, %cst_33 {dimension_numbers = #tpu.dot_dimension_numbers<[1], [0], [0], [1], [0, 0, 1, 1], [], []>} : vector<32x32xbf16>, vector<32x128xbf16>, vector<32x128xf32> -> vector<32x128xf32>
    %82 = vector.shape_cast %78 : vector<16x64xf32> to vector<2x8x64xf32>
    %83 = arith.truncf %82 : vector<2x8x64xf32> to vector<2x8x64xbf16>
    %84 = vector.extract_strided_slice %81 {offsets = [0, 0], sizes = [32, 64], strides = [1, 1]} : vector<32x128xf32> to vector<32x64xf32>
    %85 = vector.shape_cast %84 : vector<32x64xf32> to vector<2x16x64xf32>
    %86 = arith.truncf %85 : vector<2x16x64xf32> to vector<2x16x64xbf16>
    %87 = vector.extract_strided_slice %81 {offsets = [0, 64], sizes = [32, 64], strides = [1, 1]} : vector<32x128xf32> to vector<32x64xf32>
    %88 = vector.shape_cast %87 : vector<32x64xf32> to vector<2x16x64xf32>
    %89 = arith.truncf %88 : vector<2x16x64xf32> to vector<2x16x64xbf16>
    %c0_34 = arith.constant 0 : index
    %c0_35 = arith.constant 0 : index
    %90 = vector.load %arg3[%c0_34, %c0_35] : memref<2x16xf32, #tpu.memory_space<vmem>>, vector<2x16xf32>
    %91 = vector.shape_cast %90 : vector<2x16xf32> to vector<2x1x16xf32>
    %92 = vector.extract_strided_slice %83 {offsets = [0, 0, 0], sizes = [2, 8, 16], strides = [1, 1, 1]} : vector<2x8x64xbf16> to vector<2x8x16xbf16>
    %93 = vector.extract_strided_slice %86 {offsets = [0, 0, 0], sizes = [2, 16, 16], strides = [1, 1, 1]} : vector<2x16x64xbf16> to vector<2x16x16xbf16>
    %94 = vector.extract_strided_slice %89 {offsets = [0, 0, 0], sizes = [2, 16, 16], strides = [1, 1, 1]} : vector<2x16x64xbf16> to vector<2x16x16xbf16>
    "tpu.trace_start"() <{level = 10 : i32, message = "bid,bjd->bij"}> : () -> ()
    %cst_36 = arith.constant dense<0.000000e+00> : vector<2x8x16xf32>
    %95 = tpu.matmul %92, %93, %cst_36 {dimension_numbers = #tpu.dot_dimension_numbers<[2], [2], [1], [1], [0, 0, 0, 1, 1, 1], [0], [0]>} : vector<2x8x16xbf16>, vector<2x16x16xbf16>, vector<2x8x16xf32> -> vector<2x8x16xf32>
    "tpu.trace_stop"() : () -> ()
    %96 = vector.broadcast %91 : vector<2x1x16xf32> to vector<2x8x16xf32>
    %97 = arith.addf %95, %96 : vector<2x8x16xf32>
    %cst_37 = arith.constant dense<0xFF800000> : vector<2x8xf32>
    %98 = vector.multi_reduction <maximumf>, %97, %cst_37 [2] : vector<2x8x16xf32> to vector<2x8xf32>
    %99 = vector.shape_cast %98 : vector<2x8xf32> to vector<2x8x1xf32>
    %100 = vector.broadcast %99 : vector<2x8x1xf32> to vector<2x8x16xf32>
    %101 = arith.subf %97, %100 : vector<2x8x16xf32>
    %102 = math.exp %101 : vector<2x8x16xf32>
    %cst_38 = arith.constant dense<0.000000e+00> : vector<2x8xf32>
    %103 = vector.multi_reduction <add>, %102, %cst_38 [2] : vector<2x8x16xf32> to vector<2x8xf32>
    %104 = vector.shape_cast %103 : vector<2x8xf32> to vector<2x8x1xf32>
    %105 = tpu.reciprocal %104 {approx = true} : vector<2x8x1xf32> -> vector<2x8x1xf32>
    %106 = vector.broadcast %105 : vector<2x8x1xf32> to vector<2x8x16xf32>
    %107 = arith.mulf %102, %106 : vector<2x8x16xf32>
    %108 = arith.truncf %107 : vector<2x8x16xf32> to vector<2x8x16xbf16>
    "tpu.trace_start"() <{level = 10 : i32, message = "bij,bjd->bid"}> : () -> ()
    %cst_39 = arith.constant dense<0.000000e+00> : vector<2x8x16xf32>
    %109 = tpu.matmul %108, %94, %cst_39 {dimension_numbers = #tpu.dot_dimension_numbers<[2], [1], [1], [2], [0, 0, 0, 1, 1, 2], [0], [0]>} : vector<2x8x16xbf16>, vector<2x16x16xbf16>, vector<2x8x16xf32> -> vector<2x8x16xf32>
    "tpu.trace_stop"() : () -> ()
    %110 = arith.truncf %109 : vector<2x8x16xf32> to vector<2x8x16xbf16>
    %c0_40 = arith.constant 0 : index
    %c0_41 = arith.constant 0 : index
    %c0_42 = arith.constant 0 : index
    %111 = vector.load %arg16[%c0_40, %c0_41, %c0_42] : memref<2x8x64xbf16, #tpu.memory_space<vmem>>, vector<2x8x16xbf16>
    tpu.vector_store %arg16[%c0_40, %c0_41, %c0_42], %110 {strides = array<i32>} : memref<2x8x64xbf16, #tpu.memory_space<vmem>>, vector<2x8x16xbf16>,
    %112 = vector.extract_strided_slice %83 {offsets = [0, 0, 16], sizes = [2, 8, 16], strides = [1, 1, 1]} : vector<2x8x64xbf16> to vector<2x8x16xbf16>
    %113 = vector.extract_strided_slice %86 {offsets = [0, 0, 16], sizes = [2, 16, 16], strides = [1, 1, 1]} : vector<2x16x64xbf16> to vector<2x16x16xbf16>
    %114 = vector.extract_strided_slice %89 {offsets = [0, 0, 16], sizes = [2, 16, 16], strides = [1, 1, 1]} : vector<2x16x64xbf16> to vector<2x16x16xbf16>
    "tpu.trace_start"() <{level = 10 : i32, message = "bid,bjd->bij"}> : () -> ()
    %cst_43 = arith.constant dense<0.000000e+00> : vector<2x8x16xf32>
    %115 = tpu.matmul %112, %113, %cst_43 {dimension_numbers = #tpu.dot_dimension_numbers<[2], [2], [1], [1], [0, 0, 0, 1, 1, 1], [0], [0]>} : vector<2x8x16xbf16>, vector<2x16x16xbf16>, vector<2x8x16xf32> -> vector<2x8x16xf32>
    "tpu.trace_stop"() : () -> ()
    %116 = vector.broadcast %91 : vector<2x1x16xf32> to vector<2x8x16xf32>
    %117 = arith.addf %115, %116 : vector<2x8x16xf32>
    %cst_44 = arith.constant dense<0xFF800000> : vector<2x8xf32>
    %118 = vector.multi_reduction <maximumf>, %117, %cst_44 [2] : vector<2x8x16xf32> to vector<2x8xf32>
    %119 = vector.shape_cast %118 : vector<2x8xf32> to vector<2x8x1xf32>
    %120 = vector.broadcast %119 : vector<2x8x1xf32> to vector<2x8x16xf32>
    %121 = arith.subf %117, %120 : vector<2x8x16xf32>
    %122 = math.exp %121 : vector<2x8x16xf32>
    %cst_45 = arith.constant dense<0.000000e+00> : vector<2x8xf32>
    %123 = vector.multi_reduction <add>, %122, %cst_45 [2] : vector<2x8x16xf32> to vector<2x8xf32>
    %124 = vector.shape_cast %123 : vector<2x8xf32> to vector<2x8x1xf32>
    %125 = tpu.reciprocal %124 {approx = true} : vector<2x8x1xf32> -> vector<2x8x1xf32>
    %126 = vector.broadcast %125 : vector<2x8x1xf32> to vector<2x8x16xf32>
    %127 = arith.mulf %122, %126 : vector<2x8x16xf32>
    %128 = arith.truncf %127 : vector<2x8x16xf32> to vector<2x8x16xbf16>
    "tpu.trace_start"() <{level = 10 : i32, message = "bij,bjd->bid"}> : () -> ()
    %cst_46 = arith.constant dense<0.000000e+00> : vector<2x8x16xf32>
    %129 = tpu.matmul %128, %114, %cst_46 {dimension_numbers = #tpu.dot_dimension_numbers<[2], [1], [1], [2], [0, 0, 0, 1, 1, 2], [0], [0]>} : vector<2x8x16xbf16>, vector<2x16x16xbf16>, vector<2x8x16xf32> -> vector<2x8x16xf32>
    "tpu.trace_stop"() : () -> ()
    %130 = arith.truncf %129 : vector<2x8x16xf32> to vector<2x8x16xbf16>
    %c0_47 = arith.constant 0 : index
    %c0_48 = arith.constant 0 : index
    %c16 = arith.constant 16 : index
    %131 = vector.load %arg16[%c0_47, %c0_48, %c16] : memref<2x8x64xbf16, #tpu.memory_space<vmem>>, vector<2x8x16xbf16>
    tpu.vector_store %arg16[%c0_47, %c0_48, %c16], %130 {strides = array<i32>} : memref<2x8x64xbf16, #tpu.memory_space<vmem>>, vector<2x8x16xbf16>,
    %132 = vector.extract_strided_slice %83 {offsets = [0, 0, 32], sizes = [2, 8, 16], strides = [1, 1, 1]} : vector<2x8x64xbf16> to vector<2x8x16xbf16>
    %133 = vector.extract_strided_slice %86 {offsets = [0, 0, 32], sizes = [2, 16, 16], strides = [1, 1, 1]} : vector<2x16x64xbf16> to vector<2x16x16xbf16>
    %134 = vector.extract_strided_slice %89 {offsets = [0, 0, 32], sizes = [2, 16, 16], strides = [1, 1, 1]} : vector<2x16x64xbf16> to vector<2x16x16xbf16>
    "tpu.trace_start"() <{level = 10 : i32, message = "bid,bjd->bij"}> : () -> ()
    %cst_49 = arith.constant dense<0.000000e+00> : vector<2x8x16xf32>
    %135 = tpu.matmul %132, %133, %cst_49 {dimension_numbers = #tpu.dot_dimension_numbers<[2], [2], [1], [1], [0, 0, 0, 1, 1, 1], [0], [0]>} : vector<2x8x16xbf16>, vector<2x16x16xbf16>, vector<2x8x16xf32> -> vector<2x8x16xf32>
    "tpu.trace_stop"() : () -> ()
    %136 = vector.broadcast %91 : vector<2x1x16xf32> to vector<2x8x16xf32>
    %137 = arith.addf %135, %136 : vector<2x8x16xf32>
    %cst_50 = arith.constant dense<0xFF800000> : vector<2x8xf32>
    %138 = vector.multi_reduction <maximumf>, %137, %cst_50 [2] : vector<2x8x16xf32> to vector<2x8xf32>
    %139 = vector.shape_cast %138 : vector<2x8xf32> to vector<2x8x1xf32>
    %140 = vector.broadcast %139 : vector<2x8x1xf32> to vector<2x8x16xf32>
    %141 = arith.subf %137, %140 : vector<2x8x16xf32>
    %142 = math.exp %141 : vector<2x8x16xf32>
    %cst_51 = arith.constant dense<0.000000e+00> : vector<2x8xf32>
    %143 = vector.multi_reduction <add>, %142, %cst_51 [2] : vector<2x8x16xf32> to vector<2x8xf32>
    %144 = vector.shape_cast %143 : vector<2x8xf32> to vector<2x8x1xf32>
    %145 = tpu.reciprocal %144 {approx = true} : vector<2x8x1xf32> -> vector<2x8x1xf32>
    %146 = vector.broadcast %145 : vector<2x8x1xf32> to vector<2x8x16xf32>
    %147 = arith.mulf %142, %146 : vector<2x8x16xf32>
    %148 = arith.truncf %147 : vector<2x8x16xf32> to vector<2x8x16xbf16>
    "tpu.trace_start"() <{level = 10 : i32, message = "bij,bjd->bid"}> : () -> ()
    %cst_52 = arith.constant dense<0.000000e+00> : vector<2x8x16xf32>
    %149 = tpu.matmul %148, %134, %cst_52 {dimension_numbers = #tpu.dot_dimension_numbers<[2], [1], [1], [2], [0, 0, 0, 1, 1, 2], [0], [0]>} : vector<2x8x16xbf16>, vector<2x16x16xbf16>, vector<2x8x16xf32> -> vector<2x8x16xf32>
    "tpu.trace_stop"() : () -> ()
    %150 = arith.truncf %149 : vector<2x8x16xf32> to vector<2x8x16xbf16>
    %c0_53 = arith.constant 0 : index
    %c0_54 = arith.constant 0 : index
    %c32 = arith.constant 32 : index
    %151 = vector.load %arg16[%c0_53, %c0_54, %c32] : memref<2x8x64xbf16, #tpu.memory_space<vmem>>, vector<2x8x16xbf16>
    tpu.vector_store %arg16[%c0_53, %c0_54, %c32], %150 {strides = array<i32>} : memref<2x8x64xbf16, #tpu.memory_space<vmem>>, vector<2x8x16xbf16>,
    %152 = vector.extract_strided_slice %83 {offsets = [0, 0, 48], sizes = [2, 8, 16], strides = [1, 1, 1]} : vector<2x8x64xbf16> to vector<2x8x16xbf16>
    %153 = vector.extract_strided_slice %86 {offsets = [0, 0, 48], sizes = [2, 16, 16], strides = [1, 1, 1]} : vector<2x16x64xbf16> to vector<2x16x16xbf16>
    %154 = vector.extract_strided_slice %89 {offsets = [0, 0, 48], sizes = [2, 16, 16], strides = [1, 1, 1]} : vector<2x16x64xbf16> to vector<2x16x16xbf16>
    "tpu.trace_start"() <{level = 10 : i32, message = "bid,bjd->bij"}> : () -> ()
    %cst_55 = arith.constant dense<0.000000e+00> : vector<2x8x16xf32>
    %155 = tpu.matmul %152, %153, %cst_55 {dimension_numbers = #tpu.dot_dimension_numbers<[2], [2], [1], [1], [0, 0, 0, 1, 1, 1], [0], [0]>} : vector<2x8x16xbf16>, vector<2x16x16xbf16>, vector<2x8x16xf32> -> vector<2x8x16xf32>
    "tpu.trace_stop"() : () -> ()
    %156 = vector.broadcast %91 : vector<2x1x16xf32> to vector<2x8x16xf32>
    %157 = arith.addf %155, %156 : vector<2x8x16xf32>
    %cst_56 = arith.constant dense<0xFF800000> : vector<2x8xf32>
    %158 = vector.multi_reduction <maximumf>, %157, %cst_56 [2] : vector<2x8x16xf32> to vector<2x8xf32>
    %159 = vector.shape_cast %158 : vector<2x8xf32> to vector<2x8x1xf32>
    %160 = vector.broadcast %159 : vector<2x8x1xf32> to vector<2x8x16xf32>
    %161 = arith.subf %157, %160 : vector<2x8x16xf32>
    %162 = math.exp %161 : vector<2x8x16xf32>
    %cst_57 = arith.constant dense<0.000000e+00> : vector<2x8xf32>
    %163 = vector.multi_reduction <add>, %162, %cst_57 [2] : vector<2x8x16xf32> to vector<2x8xf32>
    %164 = vector.shape_cast %163 : vector<2x8xf32> to vector<2x8x1xf32>
    %165 = tpu.reciprocal %164 {approx = true} : vector<2x8x1xf32> -> vector<2x8x1xf32>
    %166 = vector.broadcast %165 : vector<2x8x1xf32> to vector<2x8x16xf32>
    %167 = arith.mulf %162, %166 : vector<2x8x16xf32>
    %168 = arith.truncf %167 : vector<2x8x16xf32> to vector<2x8x16xbf16>
    "tpu.trace_start"() <{level = 10 : i32, message = "bij,bjd->bid"}> : () -> ()
    %cst_58 = arith.constant dense<0.000000e+00> : vector<2x8x16xf32>
    %169 = tpu.matmul %168, %154, %cst_58 {dimension_numbers = #tpu.dot_dimension_numbers<[2], [1], [1], [2], [0, 0, 0, 1, 1, 2], [0], [0]>} : vector<2x8x16xbf16>, vector<2x16x16xbf16>, vector<2x8x16xf32> -> vector<2x8x16xf32>
    "tpu.trace_stop"() : () -> ()
    %170 = arith.truncf %169 : vector<2x8x16xf32> to vector<2x8x16xbf16>
    %c0_59 = arith.constant 0 : index
    %c0_60 = arith.constant 0 : index
    %c48 = arith.constant 48 : index
    %171 = vector.load %arg16[%c0_59, %c0_60, %c48] : memref<2x8x64xbf16, #tpu.memory_space<vmem>>, vector<2x8x16xbf16>
    tpu.vector_store %arg16[%c0_59, %c0_60, %c48], %170 {strides = array<i32>} : memref<2x8x64xbf16, #tpu.memory_space<vmem>>, vector<2x8x16xbf16>,
    %c0_61 = arith.constant 0 : index
    %c0_62 = arith.constant 0 : index
    %c0_63 = arith.constant 0 : index
    %172 = vector.load %arg16[%c0_61, %c0_62, %c0_63] : memref<2x8x64xbf16, #tpu.memory_space<vmem>>, vector<2x8x64xbf16>
    %173 = vector.shape_cast %172 : vector<2x8x64xbf16> to vector<16x64xbf16>
    %c0_64 = arith.constant 0 : index
    %c0_65 = arith.constant 0 : index
    %c0_66 = arith.constant 0 : index
    %174 = vector.load %arg7[%c0_64, %c0_65, %c0_66] : memref<1x64x32xbf16, #tpu.memory_space<vmem>>, vector<1x64x32xbf16>
    %175 = vector.shape_cast %174 : vector<1x64x32xbf16> to vector<64x32xbf16>
    %cst_67 = arith.constant dense<0.000000e+00> : vector<16x32xf32>
    %176 = tpu.matmul %173, %175, %cst_67 {dimension_numbers = #tpu.dot_dimension_numbers<[1], [0], [0], [1], [0, 0, 1, 1], [], []>} : vector<16x64xbf16>, vector<64x32xbf16>, vector<16x32xf32> -> vector<16x32xf32>
    %177 = vector.shape_cast %176 : vector<16x32xf32> to vector<2x8x32xf32>
    %178 = arith.addf %17, %177 : vector<2x8x32xf32>
    %cst_68 = arith.constant dense<0.000000e+00> : vector<2x8xf32>
    %179 = vector.multi_reduction <add>, %178, %cst_68 [2] : vector<2x8x32xf32> to vector<2x8xf32>
    %180 = vector.shape_cast %179 : vector<2x8xf32> to vector<2x8x1xf32>
    %cst_69 = arith.constant 3.200000e+01 : f32
    %181 = vector.broadcast %cst_69 : f32 to vector<2x8x1xf32>
    %182 = arith.divf %180, %181 : vector<2x8x1xf32>
    %183 = vector.broadcast %182 : vector<2x8x1xf32> to vector<2x8x32xf32>
    %184 = arith.subf %178, %183 : vector<2x8x32xf32>
    %185 = arith.mulf %184, %184 : vector<2x8x32xf32>
    %cst_70 = arith.constant dense<0.000000e+00> : vector<2x8xf32>
    %186 = vector.multi_reduction <add>, %185, %cst_70 [2] : vector<2x8x32xf32> to vector<2x8xf32>
    %187 = vector.shape_cast %186 : vector<2x8xf32> to vector<2x8x1xf32>
    %cst_71 = arith.constant 3.200000e+01 : f32
    %188 = vector.broadcast %cst_71 : f32 to vector<2x8x1xf32>
    %189 = arith.divf %187, %188 : vector<2x8x1xf32>
    %190 = vector.broadcast %182 : vector<2x8x1xf32> to vector<2x8x32xf32>
    %191 = arith.subf %178, %190 : vector<2x8x32xf32>
    %cst_72 = arith.constant 9.99999974E-6 : f32
    %192 = vector.broadcast %cst_72 : f32 to vector<2x8x1xf32>
    %193 = arith.addf %189, %192 : vector<2x8x1xf32>
    %194 = math.rsqrt %193 : vector<2x8x1xf32>
    %195 = vector.broadcast %194 : vector<2x8x1xf32> to vector<2x8x32xf32>
    %196 = arith.mulf %191, %195 : vector<2x8x32xf32>
    %197 = vector.shape_cast %14 : vector<32xf32> to vector<1x1x32xf32>
    %198 = vector.broadcast %197 : vector<1x1x32xf32> to vector<2x8x32xf32>
    %199 = arith.mulf %196, %198 : vector<2x8x32xf32>
    %200 = vector.shape_cast %16 : vector<32xf32> to vector<1x1x32xf32>
    %201 = vector.broadcast %200 : vector<1x1x32xf32> to vector<2x8x32xf32>
    %202 = arith.addf %199, %201 : vector<2x8x32xf32>
    %203 = vector.shape_cast %202 : vector<2x8x32xf32> to vector<16x32xf32>
    %204 = arith.truncf %203 : vector<16x32xf32> to vector<16x32xbf16>
    %c0_73 = arith.constant 0 : index
    %c0_74 = arith.constant 0 : index
    %c0_75 = arith.constant 0 : index
    %205 = vector.load %arg9[%c0_73, %c0_74, %c0_75] : memref<1x32x128xbf16, #tpu.memory_space<vmem>>, vector<1x32x128xbf16>
    %206 = vector.shape_cast %205 : vector<1x32x128xbf16> to vector<32x128xbf16>
    %cst_76 = arith.constant dense<0.000000e+00> : vector<16x128xf32>
    %207 = tpu.matmul %204, %206, %cst_76 {dimension_numbers = #tpu.dot_dimension_numbers<[1], [0], [0], [1], [0, 0, 1, 1], [], []>} : vector<16x32xbf16>, vector<32x128xbf16>, vector<16x128xf32> -> vector<16x128xf32>
    %cst_77 = arith.constant 5.000000e-01 : f32
    %208 = vector.broadcast %cst_77 : f32 to vector<16x128xf32>
    %209 = arith.mulf %208, %207 : vector<16x128xf32>
    %cst_78 = arith.constant 0.707106769 : f32
    %210 = vector.broadcast %cst_78 : f32 to vector<16x128xf32>
    %211 = arith.mulf %207, %210 : vector<16x128xf32>
    %212 = math.erf %211 : vector<16x128xf32>
    %cst_79 = arith.constant 1.000000e+00 : f32
    %213 = vector.broadcast %cst_79 : f32 to vector<16x128xf32>
    %214 = arith.addf %213, %212 : vector<16x128xf32>
    %215 = arith.mulf %209, %214 : vector<16x128xf32>
    %216 = arith.truncf %215 : vector<16x128xf32> to vector<16x128xbf16>
    %c0_80 = arith.constant 0 : index
    %c0_81 = arith.constant 0 : index
    %c0_82 = arith.constant 0 : index
    %217 = vector.load %arg10[%c0_80, %c0_81, %c0_82] : memref<1x128x32xbf16, #tpu.memory_space<vmem>>, vector<1x128x32xbf16>
    %218 = vector.shape_cast %217 : vector<1x128x32xbf16> to vector<128x32xbf16>
    %cst_83 = arith.constant dense<0.000000e+00> : vector<16x32xf32>
    %219 = tpu.matmul %216, %218, %cst_83 {dimension_numbers = #tpu.dot_dimension_numbers<[1], [0], [0], [1], [0, 0, 1, 1], [], []>} : vector<16x128xbf16>, vector<128x32xbf16>, vector<16x32xf32> -> vector<16x32xf32>
    %220 = vector.shape_cast %219 : vector<16x32xf32> to vector<2x8x32xf32>
    %221 = arith.addf %178, %220 : vector<2x8x32xf32>
    %c0_84 = arith.constant 0 : index
    %c0_85 = arith.constant 0 : index
    %c0_86 = arith.constant 0 : index
    %222 = vector.load %arg14[%c0_84, %c0_85, %c0_86] : memref<2x8x32xf32, #tpu.memory_space<vmem>>, vector<2x8x32xf32>
    tpu.vector_store %arg14[%c0_84, %c0_85, %c0_86], %221 {strides = array<i32>} : memref<2x8x32xf32, #tpu.memory_space<vmem>>, vector<2x8x32xf32>,
    %c1_i32 = arith.constant 1 : i32
    %223 = arith.cmpi eq, %arg1, %c1_i32 : i32
    %224 = arith.extui %223 : i1 to i32
    %c0_i32_87 = arith.constant 0 : i32
    %225 = arith.cmpi ne, %224, %c0_i32_87 : i32
    scf.if %225 {
      %226 = vector.shape_cast %221 : vector<2x8x32xf32> to vector<16x32xf32>
      %227 = arith.truncf %226 : vector<16x32xf32> to vector<16x32xbf16>
      %c0_88 = arith.constant 0 : index
      %c0_89 = arith.constant 0 : index
      %228 = vector.load %arg11[%c0_88, %c0_89] : memref<32x32xbf16, #tpu.memory_space<vmem>>, vector<32x32xbf16>
      %cst_90 = arith.constant dense<0.000000e+00> : vector<16x32xf32>
      %229 = tpu.matmul %227, %228, %cst_90 {dimension_numbers = #tpu.dot_dimension_numbers<[1], [0], [0], [1], [0, 0, 1, 1], [], []>} : vector<16x32xbf16>, vector<32x32xbf16>, vector<16x32xf32> -> vector<16x32xf32>
      %c0_91 = arith.constant 0 : index
      %c0_92 = arith.constant 0 : index
      %230 = vector.load %arg12[%c0_91, %c0_92] : memref<3x32xf32, #tpu.memory_space<vmem>>, vector<1x32xf32>
      %231 = vector.shape_cast %230 : vector<1x32xf32> to vector<32xf32>
      %232 = vector.shape_cast %231 : vector<32xf32> to vector<1x32xf32>
      %233 = vector.broadcast %232 : vector<1x32xf32> to vector<16x32xf32>
      %234 = arith.addf %229, %233 : vector<16x32xf32>
      %c1 = arith.constant 1 : index
      %c0_93 = arith.constant 0 : index
      %235 = vector.load %arg12[%c1, %c0_93] : memref<3x32xf32, #tpu.memory_space<vmem>>, vector<1x32xf32>
      %236 = vector.shape_cast %235 : vector<1x32xf32> to vector<32xf32>
      %c2 = arith.constant 2 : index
      %c0_94 = arith.constant 0 : index
      %237 = vector.load %arg12[%c2, %c0_94] : memref<3x32xf32, #tpu.memory_space<vmem>>, vector<1x32xf32>
      %238 = vector.shape_cast %237 : vector<1x32xf32> to vector<32xf32>
      %cst_95 = arith.constant dense<0.000000e+00> : vector<16xf32>
      %239 = vector.multi_reduction <add>, %234, %cst_95 [1] : vector<16x32xf32> to vector<16xf32>
      %240 = vector.shape_cast %239 : vector<16xf32> to vector<16x1xf32>
      %cst_96 = arith.constant 3.200000e+01 : f32
      %241 = vector.broadcast %cst_96 : f32 to vector<16x1xf32>
      %242 = arith.divf %240, %241 : vector<16x1xf32>
      %243 = vector.broadcast %242 : vector<16x1xf32> to vector<16x32xf32>
      %244 = arith.subf %234, %243 : vector<16x32xf32>
      %245 = arith.mulf %244, %244 : vector<16x32xf32>
      %cst_97 = arith.constant dense<0.000000e+00> : vector<16xf32>
      %246 = vector.multi_reduction <add>, %245, %cst_97 [1] : vector<16x32xf32> to vector<16xf32>
      %247 = vector.shape_cast %246 : vector<16xf32> to vector<16x1xf32>
      %cst_98 = arith.constant 3.200000e+01 : f32
      %248 = vector.broadcast %cst_98 : f32 to vector<16x1xf32>
      %249 = arith.divf %247, %248 : vector<16x1xf32>
      %250 = vector.broadcast %242 : vector<16x1xf32> to vector<16x32xf32>
      %251 = arith.subf %234, %250 : vector<16x32xf32>
      %cst_99 = arith.constant 9.99999974E-6 : f32
      %252 = vector.broadcast %cst_99 : f32 to vector<16x1xf32>
      %253 = arith.addf %249, %252 : vector<16x1xf32>
      %254 = math.rsqrt %253 : vector<16x1xf32>
      %255 = vector.broadcast %254 : vector<16x1xf32> to vector<16x32xf32>
      %256 = arith.mulf %251, %255 : vector<16x32xf32>
      %257 = vector.shape_cast %236 : vector<32xf32> to vector<1x32xf32>
      %258 = vector.broadcast %257 : vector<1x32xf32> to vector<16x32xf32>
      %259 = arith.mulf %256, %258 : vector<16x32xf32>
      %260 = vector.shape_cast %238 : vector<32xf32> to vector<1x32xf32>
      %261 = vector.broadcast %260 : vector<1x32xf32> to vector<16x32xf32>
      %262 = arith.addf %259, %261 : vector<16x32xf32>
      %263 = vector.shape_cast %262 : vector<16x32xf32> to vector<2x8x32xf32>
      %c0_100 = arith.constant 0 : index
      %c0_101 = arith.constant 0 : index
      %c0_102 = arith.constant 0 : index
      %264 = vector.load %arg13[%c0_100, %c0_101, %c0_102] : memref<2x8x32xf32, #tpu.memory_space<vmem>>, vector<2x8x32xf32>
      tpu.vector_store %arg13[%c0_100, %c0_101, %c0_102], %263 {strides = array<i32>} : memref<2x8x32xf32, #tpu.memory_space<vmem>>, vector<2x8x32xf32>,
    } else {
    }
    return
  }
  func.func @transform_0(%arg0: i32, %arg1: i32) -> (i32, i32, i32) {
    %c0_i32 = arith.constant 0 : i32
    %c0_i32_0 = arith.constant 0 : i32
    %c0_i32_1 = arith.constant 0 : i32
    return %arg0, %c0_i32, %c0_i32_0 : i32, i32, i32
  }
  func.func @transform_1(%arg0: i32, %arg1: i32) -> (i32, i32) {
    %c0_i32 = arith.constant 0 : i32
    %c0_i32_0 = arith.constant 0 : i32
    return %arg0, %c0_i32 : i32, i32
  }
  func.func @transform_2(%arg0: i32, %arg1: i32) -> (i32, i32) {
    %c0_i32 = arith.constant 0 : i32
    %c0_i32_0 = arith.constant 0 : i32
    %c0_i32_1 = arith.constant 0 : i32
    return %c0_i32, %c0_i32_0 : i32, i32
  }
  func.func @transform_3(%arg0: i32, %arg1: i32) -> (i32, i32, i32) {
    %c0_i32 = arith.constant 0 : i32
    %c0_i32_0 = arith.constant 0 : i32
    %c0_i32_1 = arith.constant 0 : i32
    return %arg1, %c0_i32, %c0_i32_0 : i32, i32, i32
  }
  func.func @transform_4(%arg0: i32, %arg1: i32) -> (i32, i32, i32) {
    %c0_i32 = arith.constant 0 : i32
    %c0_i32_0 = arith.constant 0 : i32
    %c0_i32_1 = arith.constant 0 : i32
    return %arg1, %c0_i32, %c0_i32_0 : i32, i32, i32
  }
  func.func @transform_5(%arg0: i32, %arg1: i32) -> (i32, i32, i32) {
    %c0_i32 = arith.constant 0 : i32
    %c0_i32_0 = arith.constant 0 : i32
    %c0_i32_1 = arith.constant 0 : i32
    return %arg1, %c0_i32, %c0_i32_0 : i32, i32, i32
  }
  func.func @transform_6(%arg0: i32, %arg1: i32) -> (i32, i32, i32) {
    %c0_i32 = arith.constant 0 : i32
    %c0_i32_0 = arith.constant 0 : i32
    %c0_i32_1 = arith.constant 0 : i32
    return %arg1, %c0_i32, %c0_i32_0 : i32, i32, i32
  }
  func.func @transform_7(%arg0: i32, %arg1: i32) -> (i32, i32, i32) {
    %c0_i32 = arith.constant 0 : i32
    %c0_i32_0 = arith.constant 0 : i32
    %c0_i32_1 = arith.constant 0 : i32
    return %arg1, %c0_i32, %c0_i32_0 : i32, i32, i32
  }
  func.func @transform_8(%arg0: i32, %arg1: i32) -> (i32, i32, i32) {
    %c0_i32 = arith.constant 0 : i32
    %c0_i32_0 = arith.constant 0 : i32
    %c0_i32_1 = arith.constant 0 : i32
    return %arg1, %c0_i32, %c0_i32_0 : i32, i32, i32
  }
  func.func @transform_9(%arg0: i32, %arg1: i32) -> (i32, i32) {
    %c0_i32 = arith.constant 0 : i32
    %c0_i32_0 = arith.constant 0 : i32
    %c0_i32_1 = arith.constant 0 : i32
    return %c0_i32, %c0_i32_0 : i32, i32
  }
  func.func @transform_10(%arg0: i32, %arg1: i32) -> (i32, i32) {
    %c0_i32 = arith.constant 0 : i32
    %c0_i32_0 = arith.constant 0 : i32
    %c0_i32_1 = arith.constant 0 : i32
    return %c0_i32, %c0_i32_0 : i32, i32
  }
  func.func @transform_11(%arg0: i32, %arg1: i32) -> (i32, i32, i32) {
    %c0_i32 = arith.constant 0 : i32
    %c0_i32_0 = arith.constant 0 : i32
    %c0_i32_1 = arith.constant 0 : i32
    return %arg0, %c0_i32, %c0_i32_0 : i32, i32, i32
  }
}

</mosaic_0001>

<llo_original>
// kernel: resampler_forward.1
$region0: #{resampler_forward.1}
  #allocation0 [shape = 'u32[]', space=smem, size = 0x4, offset = 0x4, fixed_abs, tag = 'smem constant byte address 0x4 - core index']
  #allocation1 [shape = 'u32[144,128]{1,0:T(1,128)}', space=vmem, size = 0x12000, scoped, tag = 'internal scratch']
  #allocation2 [shape = 'f32[2,8,32]{2,1,0:T(8,128)}', space=vmem, size = 0x2000, scoped, tag = 'scratch operand']
  #allocation3 [shape = 'bf16[2,16,32]{2,1,0:T(16,128)(2,1)}', space=vmem, size = 0x2000, scoped, tag = 'scratch operand']
  #allocation4 [shape = 'bf16[2,8,64]{2,1,0:T(8,128)(2,1)}', space=vmem, size = 0x1000, scoped, tag = 'scratch operand']
  %s0 = inlined_call_operand.vmem [shape: bf16[2,8,32], index: 0, kind: input, shape index: {}]
  %s1 = inlined_call_operand.vmem [shape: f32[2,16], index: 1, kind: input, shape index: {}]
  %s2 = inlined_call_operand.vmem [shape: f32[8,32], index: 2, kind: input, shape index: {}]
  %s3 = inlined_call_operand.vmem [shape: bf16[2,32,64], index: 3, kind: input, shape index: {}]
  %s4 = inlined_call_operand.vmem [shape: bf16[2,32,128], index: 4, kind: input, shape index: {}]
  %s5 = inlined_call_operand.vmem [shape: bf16[2,64,32], index: 5, kind: input, shape index: {}]
  %s6 = inlined_call_operand.vmem [shape: f32[2,6,32], index: 6, kind: input, shape index: {}]
  %s7 = inlined_call_operand.vmem [shape: bf16[2,32,128], index: 7, kind: input, shape index: {}]
  %s8 = inlined_call_operand.vmem [shape: bf16[2,128,32], index: 8, kind: input, shape index: {}]
  %s9 = inlined_call_operand.vmem [shape: bf16[32,32], index: 9, kind: input, shape index: {}]
  %s10 = inlined_call_operand.vmem [shape: f32[3,32], index: 10, kind: input, shape index: {}]
  %s11 = inlined_call_operand.hbm [shape: f32[2,8,32], index: 11, kind: output, shape index: {}]
  %s12 = sld [smem:[#allocation0]]
  $region85: #{resampler_forward.1} parent=0
    _
  %s14 = ssub.s32 1, %s12
  %s15 = scalar_select 0, %s14, %s12
  $region1: #{resampler_forward.1} parent=0
    #allocation5 [shape = 'u8[8192]{0}', space=vmem, size = 0x2000, scoped, tag = 'output window, operand 0, single buffered']
    #allocation6 [shape = 's32[2]{0}', space=sflag, size = 0x8, scoped, tag = 'scoped memory for resampler_forward.1']
    %16 = vsyncpa [#allocation6], 0
    loop: start=0, step=1, limit=4
    $region2: #{resampler_forward.1} parent=1 // loop_pre_header
      _
    $region3: #{resampler_forward.1} parent=1 // loop_header
      %s18 = sphi 0, %s22
      %p19 = scmp.ge.s32.totalorder %s18, 4
      %s25 = sphi 0, %s37
      %s26 = sphi 0, %s33
      %s27 = sphi 0, %s25
      %s28 = sphi 0, %s26
      %s29 = sphi 0, %s27
      %s30 = sphi 0, %s28
      %s40 = sphi 0, %s42
      %s43 = sphi 0, %s40
      %s44 = sphi 0, %s43
      %s60 = sphi 0, %s44
      %s66 = sphi 0, %s68
      %s69 = sphi 0, %s66
      %s70 = sphi 0, %s69
      %s86 = sphi 0, %s70
      %s90 = sphi 0, %s90
      %s92 = sphi 0, %s90
      %s93 = sphi 0, %s92
      %s107 = sphi 0, %s93
      %s113 = sphi 0, %s115
      %s116 = sphi 0, %s113
      %s117 = sphi 0, %s116
      %s133 = sphi 0, %s117
      %s139 = sphi 0, %s141
      %s142 = sphi 0, %s139
      %s143 = sphi 0, %s142
      %s159 = sphi 0, %s143
      %s165 = sphi 0, %s167
      %s168 = sphi 0, %s165
      %s169 = sphi 0, %s168
      %s185 = sphi 0, %s169
      %s191 = sphi 0, %s193
      %s194 = sphi 0, %s191
      %s195 = sphi 0, %s194
      %s211 = sphi 0, %s195
      %s217 = sphi 0, %s219
      %s220 = sphi 0, %s217
      %s221 = sphi 0, %s220
      %s237 = sphi 0, %s221
      %s243 = sphi 0, %s245
      %s246 = sphi 0, %s243
      %s247 = sphi 0, %s246
      %s263 = sphi 0, %s247
      %s267 = sphi 0, %s267
      %s269 = sphi 0, %s267
      %s270 = sphi 0, %s269
      %s284 = sphi 0, %s270
      %s288 = sphi 0, %s288
      %s290 = sphi 0, %s288
      %s291 = sphi 0, %s290
      %s305 = sphi 0, %s291
      %s311 = sphi 0, %s313
      %s314 = sphi 0, %s311
      %s315 = sphi 0, %s314
      %s331 = sphi 0, %s315
    $region4: #{resampler_forward.1} parent=1 // loop_header_branch
      %21 = sbr.rel (%p19) target = $region8
    $region5: #{resampler_forward.1} parent=1 // loop_body
      %s23 = ssub.s32 %s18, 1
      %s24 = ssub.s32 %s18, 2
      %s31 = sadd.s32 1, %s26
      %p32 = scmp.ge.s32.totalorder %s31, 2
      %s33 = scalar_select %p32, 0, %s31
      %s34 = sadd.s32 1, %s25
      %s35 = scalar_select %p32, %s34, %s25
      %p36 = scmp.ge.s32.totalorder %s35, 1
      %s37 = scalar_select %p36, 0, %s35
      %s38 = ssub.s32 %s25, %s37
      %p39 = scmp.eq.s32.totalorder %s38, 0
      %s41 = sadd.s32 %s40, 1
      %s42 = scalar_select %p39, %s40, %s41
      %p45 = pneg %p39
      %p46 = scmp.eq.s32.totalorder %s18, 1
      %p47 = por %p45, %p46
      %p48 = scmp.ne.s32.totalorder %s40, %s43
      %p49 = scmp.eq.s32.totalorder %s18, 0
      %p50 = por %p48, %p49
      %p51 = scmp.ne.s32.totalorder %s40, %s43
      %p52 = scmp.eq.s32.totalorder %s23, 1
      %p53 = por %p51, %p52
      %p54 = scmp.ne.s32.totalorder %s43, %s44
      %p55 = scmp.eq.s32.totalorder %s23, 0
      %p56 = por %p54, %p55
      %p57 = scmp.ne.s32.totalorder %s43, %s44
      %p58 = scmp.eq.s32.totalorder %s24, 1
      %p59 = por %p57, %p58
      %p61 = scmp.ne.s32.totalorder %s44, %s60
      %p62 = scmp.eq.s32.totalorder %s24, 0
      %p63 = por %p61, %p62
      %s64 = ssub.s32 %s25, %s37
      %p65 = scmp.eq.s32.totalorder %s64, 0
      %s67 = sadd.s32 %s66, 1
      %s68 = scalar_select %p65, %s66, %s67
      %p71 = pneg %p65
      %p72 = scmp.eq.s32.totalorder %s18, 1
      %p73 = por %p71, %p72
      %p74 = scmp.ne.s32.totalorder %s66, %s69
      %p75 = scmp.eq.s32.totalorder %s18, 0
      %p76 = por %p74, %p75
      %p77 = scmp.ne.s32.totalorder %s66, %s69
      %p78 = scmp.eq.s32.totalorder %s23, 1
      %p79 = por %p77, %p78
      %p80 = scmp.ne.s32.totalorder %s69, %s70
      %p81 = scmp.eq.s32.totalorder %s23, 0
      %p82 = por %p80, %p81
      %p83 = scmp.ne.s32.totalorder %s69, %s70
      %p84 = scmp.eq.s32.totalorder %s24, 1
      %p85 = por %p83, %p84
      %p87 = scmp.ne.s32.totalorder %s70, %s86
      %p88 = scmp.eq.s32.totalorder %s24, 0
      %p89 = por %p87, %p88
      %s91 = sadd.s32 %s90, 1
      %p94 = scmp.eq.s32.totalorder %s18, 1
      %p95 = scmp.ne.s32.totalorder %s90, %s92
      %p96 = scmp.eq.s32.totalorder %s18, 0
      %p97 = por %p95, %p96
      %p98 = scmp.ne.s32.totalorder %s90, %s92
      %p99 = scmp.eq.s32.totalorder %s23, 1
      %p100 = por %p98, %p99
      %p101 = scmp.ne.s32.totalorder %s92, %s93
      %p102 = scmp.eq.s32.totalorder %s23, 0
      %p103 = por %p101, %p102
      %p104 = scmp.ne.s32.totalorder %s92, %s93
      %p105 = scmp.eq.s32.totalorder %s24, 1
      %p106 = por %p104, %p105
      %p108 = scmp.ne.s32.totalorder %s93, %s107
      %p109 = scmp.eq.s32.totalorder %s24, 0
      %p110 = por %p108, %p109
      %s111 = ssub.s32 %s26, %s33
      %p112 = scmp.eq.s32.totalorder %s111, 0
      %s114 = sadd.s32 %s113, 1
      %s115 = scalar_select %p112, %s113, %s114
      %p118 = pneg %p112
      %p119 = scmp.eq.s32.totalorder %s18, 1
      %p120 = por %p118, %p119
      %p121 = scmp.ne.s32.totalorder %s113, %s116
      %p122 = scmp.eq.s32.totalorder %s18, 0
      %p123 = por %p121, %p122
      %p124 = scmp.ne.s32.totalorder %s113, %s116
      %p125 = scmp.eq.s32.totalorder %s23, 1
      %p126 = por %p124, %p125
      %p127 = scmp.ne.s32.totalorder %s116, %s117
      %p128 = scmp.eq.s32.totalorder %s23, 0
      %p129 = por %p127, %p128
      %p130 = scmp.ne.s32.totalorder %s116, %s117
      %p131 = scmp.eq.s32.totalorder %s24, 1
      %p132 = por %p130, %p131
      %p134 = scmp.ne.s32.totalorder %s117, %s133
      %p135 = scmp.eq.s32.totalorder %s24, 0
      %p136 = por %p134, %p135
      %s137 = ssub.s32 %s26, %s33
      %p138 = scmp.eq.s32.totalorder %s137, 0
      %s140 = sadd.s32 %s139, 1
      %s141 = scalar_select %p138, %s139, %s140
      %p144 = pneg %p138
      %p145 = scmp.eq.s32.totalorder %s18, 1
      %p146 = por %p144, %p145
      %p147 = scmp.ne.s32.totalorder %s139, %s142
      %p148 = scmp.eq.s32.totalorder %s18, 0
      %p149 = por %p147, %p148
      %p150 = scmp.ne.s32.totalorder %s139, %s142
      %p151 = scmp.eq.s32.totalorder %s23, 1
      %p152 = por %p150, %p151
      %p153 = scmp.ne.s32.totalorder %s142, %s143
      %p154 = scmp.eq.s32.totalorder %s23, 0
      %p155 = por %p153, %p154
      %p156 = scmp.ne.s32.totalorder %s142, %s143
      %p157 = scmp.eq.s32.totalorder %s24, 1
      %p158 = por %p156, %p157
      %p160 = scmp.ne.s32.totalorder %s143, %s159
      %p161 = scmp.eq.s32.totalorder %s24, 0
      %p162 = por %p160, %p161
      %s163 = ssub.s32 %s26, %s33
      %p164 = scmp.eq.s32.totalorder %s163, 0
      %s166 = sadd.s32 %s165, 1
      %s167 = scalar_select %p164, %s165, %s166
      %p170 = pneg %p164
      %p171 = scmp.eq.s32.totalorder %s18, 1
      %p172 = por %p170, %p171
      %p173 = scmp.ne.s32.totalorder %s165, %s168
      %p174 = scmp.eq.s32.totalorder %s18, 0
      %p175 = por %p173, %p174
      %p176 = scmp.ne.s32.totalorder %s165, %s168
      %p177 = scmp.eq.s32.totalorder %s23, 1
      %p178 = por %p176, %p177
      %p179 = scmp.ne.s32.totalorder %s168, %s169
      %p180 = scmp.eq.s32.totalorder %s23, 0
      %p181 = por %p179, %p180
      %p182 = scmp.ne.s32.totalorder %s168, %s169
      %p183 = scmp.eq.s32.totalorder %s24, 1
      %p184 = por %p182, %p183
      %p186 = scmp.ne.s32.totalorder %s169, %s185
      %p187 = scmp.eq.s32.totalorder %s24, 0
      %p188 = por %p186, %p187
      %s189 = ssub.s32 %s26, %s33
      %p190 = scmp.eq.s32.totalorder %s189, 0
      %s192 = sadd.s32 %s191, 1
      %s193 = scalar_select %p190, %s191, %s192
      %p196 = pneg %p190
      %p197 = scmp.eq.s32.totalorder %s18, 1
      %p198 = por %p196, %p197
      %p199 = scmp.ne.s32.totalorder %s191, %s194
      %p200 = scmp.eq.s32.totalorder %s18, 0
      %p201 = por %p199, %p200
      %p202 = scmp.ne.s32.totalorder %s191, %s194
      %p203 = scmp.eq.s32.totalorder %s23, 1
      %p204 = por %p202, %p203
      %p205 = scmp.ne.s32.totalorder %s194, %s195
      %p206 = scmp.eq.s32.totalorder %s23, 0
      %p207 = por %p205, %p206
      %p208 = scmp.ne.s32.totalorder %s194, %s195
      %p209 = scmp.eq.s32.totalorder %s24, 1
      %p210 = por %p208, %p209
      %p212 = scmp.ne.s32.totalorder %s195, %s211
      %p213 = scmp.eq.s32.totalorder %s24, 0
      %p214 = por %p212, %p213
      %s215 = ssub.s32 %s26, %s33
      %p216 = scmp.eq.s32.totalorder %s215, 0
      %s218 = sadd.s32 %s217, 1
      %s219 = scalar_select %p216, %s217, %s218
      %p222 = pneg %p216
      %p223 = scmp.eq.s32.totalorder %s18, 1
      %p224 = por %p222, %p223
      %p225 = scmp.ne.s32.totalorder %s217, %s220
      %p226 = scmp.eq.s32.totalorder %s18, 0
      %p227 = por %p225, %p226
      %p228 = scmp.ne.s32.totalorder %s217, %s220
      %p229 = scmp.eq.s32.totalorder %s23, 1
      %p230 = por %p228, %p229
      %p231 = scmp.ne.s32.totalorder %s220, %s221
      %p232 = scmp.eq.s32.totalorder %s23, 0
      %p233 = por %p231, %p232
      %p234 = scmp.ne.s32.totalorder %s220, %s221
      %p235 = scmp.eq.s32.totalorder %s24, 1
      %p236 = por %p234, %p235
      %p238 = scmp.ne.s32.totalorder %s221, %s237
      %p239 = scmp.eq.s32.totalorder %s24, 0
      %p240 = por %p238, %p239
      %s241 = ssub.s32 %s26, %s33
      %p242 = scmp.eq.s32.totalorder %s241, 0
      %s244 = sadd.s32 %s243, 1
      %s245 = scalar_select %p242, %s243, %s244
      %p248 = pneg %p242
      %p249 = scmp.eq.s32.totalorder %s18, 1
      %p250 = por %p248, %p249
      %p251 = scmp.ne.s32.totalorder %s243, %s246
      %p252 = scmp.eq.s32.totalorder %s18, 0
      %p253 = por %p251, %p252
      %p254 = scmp.ne.s32.totalorder %s243, %s246
      %p255 = scmp.eq.s32.totalorder %s23, 1
      %p256 = por %p254, %p255
      %p257 = scmp.ne.s32.totalorder %s246, %s247
      %p258 = scmp.eq.s32.totalorder %s23, 0
      %p259 = por %p257, %p258
      %p260 = scmp.ne.s32.totalorder %s246, %s247
      %p261 = scmp.eq.s32.totalorder %s24, 1
      %p262 = por %p260, %p261
      %p264 = scmp.ne.s32.totalorder %s247, %s263
      %p265 = scmp.eq.s32.totalorder %s24, 0
      %p266 = por %p264, %p265
      %s268 = sadd.s32 %s267, 1
      %p271 = scmp.eq.s32.totalorder %s18, 1
      %p272 = scmp.ne.s32.totalorder %s267, %s269
      %p273 = scmp.eq.s32.totalorder %s18, 0
      %p274 = por %p272, %p273
      %p275 = scmp.ne.s32.totalorder %s267, %s269
      %p276 = scmp.eq.s32.totalorder %s23, 1
      %p277 = por %p275, %p276
      %p278 = scmp.ne.s32.totalorder %s269, %s270
      %p279 = scmp.eq.s32.totalorder %s23, 0
      %p280 = por %p278, %p279
      %p281 = scmp.ne.s32.totalorder %s269, %s270
      %p282 = scmp.eq.s32.totalorder %s24, 1
      %p283 = por %p281, %p282
      %p285 = scmp.ne.s32.totalorder %s270, %s284
      %p286 = scmp.eq.s32.totalorder %s24, 0
      %p287 = por %p285, %p286
      %s289 = sadd.s32 %s288, 1
      %p292 = scmp.eq.s32.totalorder %s18, 1
      %p293 = scmp.ne.s32.totalorder %s288, %s290
      %p294 = scmp.eq.s32.totalorder %s18, 0
      %p295 = por %p293, %p294
      %p296 = scmp.ne.s32.totalorder %s288, %s290
      %p297 = scmp.eq.s32.totalorder %s23, 1
      %p298 = por %p296, %p297
      %p299 = scmp.ne.s32.totalorder %s290, %s291
      %p300 = scmp.eq.s32.totalorder %s23, 0
      %p301 = por %p299, %p300
      %p302 = scmp.ne.s32.totalorder %s290, %s291
      %p303 = scmp.eq.s32.totalorder %s24, 1
      %p304 = por %p302, %p303
      %p306 = scmp.ne.s32.totalorder %s291, %s305
      %p307 = scmp.eq.s32.totalorder %s24, 0
      %p308 = por %p306, %p307
      %s309 = ssub.s32 %s25, %s37
      %p310 = scmp.eq.s32.totalorder %s309, 0
      %s312 = sadd.s32 %s311, 1
      %s313 = scalar_select %p310, %s311, %s312
      %p316 = pneg %p310
      %p317 = scmp.eq.s32.totalorder %s18, 1
      %p318 = por %p316, %p317
      %p319 = scmp.ne.s32.totalorder %s311, %s314
      %p320 = scmp.eq.s32.totalorder %s18, 0
      %p321 = por %p319, %p320
      %p322 = scmp.ne.s32.totalorder %s311, %s314
      %p323 = scmp.eq.s32.totalorder %s23, 1
      %p324 = por %p322, %p323
      %p325 = scmp.ne.s32.totalorder %s314, %s315
      %p326 = scmp.eq.s32.totalorder %s23, 0
      %p327 = por %p325, %p326
      %p328 = scmp.ne.s32.totalorder %s314, %s315
      %p329 = scmp.eq.s32.totalorder %s24, 1
      %p330 = por %p328, %p329
      %p332 = scmp.ne.s32.totalorder %s315, %s331
      %p333 = scmp.eq.s32.totalorder %s24, 0
      %p334 = por %p332, %p333
      %p335 = scmp.le.s32.totalorder 1, %s18
      %p336 = scmp.lt.s32.totalorder %s18, 3
      %p337 = pnand %p335, %p336
      %p338 = pneg %p337
      // Predicated region
      $region9: #{resampler_forward.1} parent=5 // pred_check
        _
      $region10: #{resampler_forward.1} parent=5 // pred_check_branch
        %340 = sbr.rel (%p337) target = $region12
      $region11: #{resampler_forward.1} parent=5 // pred_region
        %s341 = ssub.s32 %s18, 1
        // Predicated region
        $region13: #{resampler_forward.1} parent=11 // pred_check
          %p342 = pneg %p56
        $region14: #{resampler_forward.1} parent=11 // pred_check_branch
          %344 = sbr.rel (%p342) target = $region16
        $region15: #{resampler_forward.1} parent=11 // pred_region
          %s345 = smul.u32 2, %s27
          %p346 = scmp.lt.s32.totalorder %s345, 1
          %s347 = scalar_select %p346, %s345, 1
          %s348 = smul.addr %s347, 4
          %s349 = scalar_lea.vmem %s0, %s348
          %s350 = smul.u32 2, %s27
        $region16: #{resampler_forward.1} parent=11 // pred_fallthru
          _
        // Predicated region
        $region17: #{resampler_forward.1} parent=11 // pred_check
          %p351 = pneg %p82
        $region18: #{resampler_forward.1} parent=11 // pred_check_branch
          %353 = sbr.rel (%p351) target = $region20
        $region19: #{resampler_forward.1} parent=11 // pred_region
          %p354 = scmp.lt.s32.totalorder %s27, 0
          %s355 = scalar_select %p354, %s27, 0
          %s356 = smul.addr %s355, 2
          %s357 = scalar_lea.vmem %s1, %s356
        $region20: #{resampler_forward.1} parent=11 // pred_fallthru
          _
        // Predicated region
        $region21: #{resampler_forward.1} parent=11 // pred_check
          %p358 = pneg %p103
        $region22: #{resampler_forward.1} parent=11 // pred_check_branch
          %360 = sbr.rel (%p358) target = $region24
        $region23: #{resampler_forward.1} parent=11 // pred_region
          _
        $region24: #{resampler_forward.1} parent=11 // pred_fallthru
          _
        // Predicated region
        $region25: #{resampler_forward.1} parent=11 // pred_check
          %p361 = pneg %p280
        $region26: #{resampler_forward.1} parent=11 // pred_check_branch
          %363 = sbr.rel (%p361) target = $region28
        $region27: #{resampler_forward.1} parent=11 // pred_region
          _
        $region28: #{resampler_forward.1} parent=11 // pred_fallthru
          _
        // Predicated region
        $region29: #{resampler_forward.1} parent=11 // pred_check
          %p364 = pneg %p301
        $region30: #{resampler_forward.1} parent=11 // pred_check_branch
          %366 = sbr.rel (%p364) target = $region32
        $region31: #{resampler_forward.1} parent=11 // pred_region
          _
        $region32: #{resampler_forward.1} parent=11 // pred_fallthru
          _
      $region12: #{resampler_forward.1} parent=5 // pred_fallthru
        _
      %p367 = scmp.lt.s32.totalorder %s18, 2
      // Predicated region
      $region33: #{resampler_forward.1} parent=5 // pred_check
        %p368 = pneg %p367
      $region34: #{resampler_forward.1} parent=5 // pred_check_branch
        %370 = sbr.rel (%p368) target = $region36
      $region35: #{resampler_forward.1} parent=5 // pred_region
        // Predicated region
        $region37: #{resampler_forward.1} parent=35 // pred_check
          %p371 = pneg %p123
        $region38: #{resampler_forward.1} parent=35 // pred_check_branch
          %373 = sbr.rel (%p371) target = $region40
        $region39: #{resampler_forward.1} parent=35 // pred_region
          %p374 = scmp.lt.s32.totalorder %s26, 1
          %s375 = scalar_select %p374, %s26, 1
          %s376 = smul.addr %s375, 4
          %s377 = smul.addr %s376, 4
          %s378 = scalar_lea.vmem %s3, %s377
        $region40: #{resampler_forward.1} parent=35 // pred_fallthru
          _
        // Predicated region
        $region41: #{resampler_forward.1} parent=35 // pred_check
          %p379 = pneg %p149
        $region42: #{resampler_forward.1} parent=35 // pred_check_branch
          %381 = sbr.rel (%p379) target = $region44
        $region43: #{resampler_forward.1} parent=35 // pred_region
          %p382 = scmp.lt.s32.totalorder %s26, 1
          %s383 = scalar_select %p382, %s26, 1
          %s384 = smul.addr %s383, 4
          %s385 = smul.addr %s384, 4
          %s386 = scalar_lea.vmem %s4, %s385
        $region44: #{resampler_forward.1} parent=35 // pred_fallthru
          _
        // Predicated region
        $region45: #{resampler_forward.1} parent=35 // pred_check
          %p387 = pneg %p175
        $region46: #{resampler_forward.1} parent=35 // pred_check_branch
          %389 = sbr.rel (%p387) target = $region48
        $region47: #{resampler_forward.1} parent=35 // pred_region
          %p390 = scmp.lt.s32.totalorder %s26, 1
          %s391 = scalar_select %p390, %s26, 1
          %s392 = smul.addr %s391, 8
          %s393 = smul.addr %s392, 4
          %s394 = scalar_lea.vmem %s5, %s393
        $region48: #{resampler_forward.1} parent=35 // pred_fallthru
          _
        // Predicated region
        $region49: #{resampler_forward.1} parent=35 // pred_check
          %p395 = pneg %p201
        $region50: #{resampler_forward.1} parent=35 // pred_check_branch
          %397 = sbr.rel (%p395) target = $region52
        $region51: #{resampler_forward.1} parent=35 // pred_region
          %p398 = scmp.lt.s32.totalorder %s26, 1
          %s399 = scalar_select %p398, %s26, 1
          %s400 = smul.addr %s399, 8
          %s401 = scalar_lea.vmem %s6, %s400
        $region52: #{resampler_forward.1} parent=35 // pred_fallthru
          _
        // Predicated region
        $region53: #{resampler_forward.1} parent=35 // pred_check
          %p402 = pneg %p227
        $region54: #{resampler_forward.1} parent=35 // pred_check_branch
          %404 = sbr.rel (%p402) target = $region56
        $region55: #{resampler_forward.1} parent=35 // pred_region
          %p405 = scmp.lt.s32.totalorder %s26, 1
          %s406 = scalar_select %p405, %s26, 1
          %s407 = smul.addr %s406, 4
          %s408 = smul.addr %s407, 4
          %s409 = scalar_lea.vmem %s7, %s408
        $region56: #{resampler_forward.1} parent=35 // pred_fallthru
          _
        // Predicated region
        $region57: #{resampler_forward.1} parent=35 // pred_check
          %p410 = pneg %p253
        $region58: #{resampler_forward.1} parent=35 // pred_check_branch
          %412 = sbr.rel (%p410) target = $region60
        $region59: #{resampler_forward.1} parent=35 // pred_region
          %p413 = scmp.lt.s32.totalorder %s26, 1
          %s414 = scalar_select %p413, %s26, 1
          %s415 = smul.addr %s414, 16
          %s416 = smul.addr %s415, 4
          %s417 = scalar_lea.vmem %s8, %s416
        $region60: #{resampler_forward.1} parent=35 // pred_fallthru
          _
      $region36: #{resampler_forward.1} parent=5 // pred_fallthru
        _
      %p418 = scmp.le.s32.totalorder 1, %s18
      %p419 = scmp.lt.s32.totalorder %s18, 3
      %p420 = pnand %p418, %p419
      %p421 = pneg %p420
      // Predicated region
      $region61: #{resampler_forward.1} parent=5 // pred_check
        _
      $region62: #{resampler_forward.1} parent=5 // pred_check_branch
        %423 = sbr.rel (%p420) target = $region64
      $region63: #{resampler_forward.1} parent=5 // pred_region
        %s424 = ssub.s32 %s18, 1
        %s425 = smul.u32 2, %s27
        %p426 = scmp.lt.s32.totalorder %s425, 1
        %s427 = scalar_select %p426, %s425, 1
        %s428 = smul.addr %s427, 4
        %s429 = scalar_lea.vmem %s0, %s428
        %p430 = pneg %p56
        %p431 = pneg %p53
        %p432 = scmp.lt.s32.totalorder %s27, 0
        %s433 = scalar_select %p432, %s27, 0
        %s434 = smul.addr %s433, 2
        %s435 = scalar_lea.vmem %s1, %s434
        %p436 = pneg %p82
        %p437 = pneg %p79
        %p438 = pneg %p103
        %p439 = pneg %p100
        %p440 = scmp.lt.s32.totalorder %s28, 1
        %s441 = scalar_select %p440, %s28, 1
        %s442 = smul.addr %s441, 4
        %s443 = smul.addr %s442, 4
        %s444 = scalar_lea.vmem %s3, %s443
        %p445 = pneg %p129
        %p446 = pneg %p126
        %p447 = scmp.lt.s32.totalorder %s28, 1
        %s448 = scalar_select %p447, %s28, 1
        %s449 = smul.addr %s448, 4
        %s450 = smul.addr %s449, 4
        %s451 = scalar_lea.vmem %s4, %s450
        %p452 = pneg %p155
        %p453 = pneg %p152
        %p454 = scmp.lt.s32.totalorder %s28, 1
        %s455 = scalar_select %p454, %s28, 1
        %s456 = smul.addr %s455, 8
        %s457 = smul.addr %s456, 4
        %s458 = scalar_lea.vmem %s5, %s457
        %p459 = pneg %p181
        %p460 = pneg %p178
        %p461 = scmp.lt.s32.totalorder %s28, 1
        %s462 = scalar_select %p461, %s28, 1
        %s463 = smul.addr %s462, 8
        %s464 = scalar_lea.vmem %s6, %s463
        %p465 = pneg %p207
        %p466 = pneg %p204
        %p467 = scmp.lt.s32.totalorder %s28, 1
        %s468 = scalar_select %p467, %s28, 1
        %s469 = smul.addr %s468, 4
        %s470 = smul.addr %s469, 4
        %s471 = scalar_lea.vmem %s7, %s470
        %p472 = pneg %p233
        %p473 = pneg %p230
        %p474 = scmp.lt.s32.totalorder %s28, 1
        %s475 = scalar_select %p474, %s28, 1
        %s476 = smul.addr %s475, 16
        %s477 = smul.addr %s476, 4
        %s478 = scalar_lea.vmem %s8, %s477
        %p479 = pneg %p259
        %p480 = pneg %p256
        %p481 = pneg %p280
        %p482 = pneg %p277
        %p483 = pneg %p301
        %p484 = pneg %p298
        %p485 = pneg %p327
        %p486 = pneg %p324
        %s487 = smul.u32 2, %s27
        %p488 = scmp.lt.s32.totalorder %s487, 1
        %s489 = scalar_select %p488, %s487, 1
        %s490 = smul.addr %s489, 4
        %s491 = scalar_lea.vmem %s0, %s490
        %s492 = smul.u32 2, %s27
        %p493 = scmp.lt.s32.totalorder %s27, 0
        %s494 = scalar_select %p493, %s27, 0
        %s495 = smul.addr %s494, 2
        %s496 = scalar_lea.vmem %s1, %s495
        %p497 = scmp.lt.s32.totalorder %s28, 1
        %s498 = scalar_select %p497, %s28, 1
        %s499 = smul.addr %s498, 4
        %s500 = smul.addr %s499, 4
        %s501 = scalar_lea.vmem %s3, %s500
        %p502 = scmp.lt.s32.totalorder %s28, 1
        %s503 = scalar_select %p502, %s28, 1
        %s504 = smul.addr %s503, 4
        %s505 = smul.addr %s504, 4
        %s506 = scalar_lea.vmem %s4, %s505
        %p507 = scmp.lt.s32.totalorder %s28, 1
        %s508 = scalar_select %p507, %s28, 1
        %s509 = smul.addr %s508, 8
        %s510 = smul.addr %s509, 4
        %s511 = scalar_lea.vmem %s5, %s510
        %p512 = scmp.lt.s32.totalorder %s28, 1
        %s513 = scalar_select %p512, %s28, 1
        %s514 = smul.addr %s513, 8
        %s515 = scalar_lea.vmem %s6, %s514
        %p516 = scmp.lt.s32.totalorder %s28, 1
        %s517 = scalar_select %p516, %s28, 1
        %s518 = smul.addr %s517, 4
        %s519 = smul.addr %s518, 4
        %s520 = scalar_lea.vmem %s7, %s519
        %p521 = scmp.lt.s32.totalorder %s28, 1
        %s522 = scalar_select %p521, %s28, 1
        %s523 = smul.addr %s522, 16
        %s524 = smul.addr %s523, 4
        %s525 = scalar_lea.vmem %s8, %s524
        %s526 = smul.u32 2, %s27
        %p528 = scmp.eq.s32.totalorder %s28, 0
        // Predicated region
        $region65: #{resampler_forward.1} parent=63 // pred_check
          %p529 = pneg %p528
        $region66: #{resampler_forward.1} parent=63 // pred_check_branch
          %531 = sbr.rel (%p529) target = $region68
        $region67: #{resampler_forward.1} parent=63 // pred_region
          %v532 = vld [vmem:[%s2] sm:$0xff]
          %vm533 = vcmask 261120
          %534 = vst.msk [vmem:[#allocation2] sm:$0xff] %vm533, %v532
          %535 = vst.msk [vmem:[#allocation2 + $0x8] sm:$0xff] %vm533, %v532
        $region68: #{resampler_forward.1} parent=63 // pred_fallthru
          _
        %v536 = vld [vmem:[%s515] sm:$0x3f]
        %v537 = vld [vmem:[#allocation2] sm:$0xff]
        %v538 = vld [vmem:[#allocation2 + $0x8] sm:$0xff]
        %v539 = vld [vmem:[%s491] sm:$0xf]
        %v540 = vld [vmem:[%s491 + $0x4] sm:$0xf]
        %v541 = vunpack.c.l.bf16 %v539
        %v542 = vunpack.c.l.bf16 %v540
        %vm543 = vcmask 261120
        %v544 = vsel %vm543, %v541, 0.0
        %545 = vadd.xlane.f32.xlu0 %v544
        %v546 = vpop.xlane.xlu0 %545
        %v547 = vsel %vm543, %v542, 0.0
        %548 = vadd.xlane.f32.xlu0 %v547
        %v549 = vpop.xlane.xlu0 %548
        %v550 = vrcp.pop 32.0
        %v551 = vmul.f32 %v546, %v550
        %v552 = vmul.f32 %v549, %v550
        %v553 = vsub.f32 %v541, %v551
        %v554 = vsub.f32 %v542, %v552
        %v555 = vmul.f32 %v553, %v553
        %v556 = vmul.f32 %v554, %v554
        %v557 = vsel %vm543, %v555, 0.0
        %558 = vadd.xlane.f32.xlu0 %v557
        %v559 = vpop.xlane.xlu0 %558
        %v560 = vsel %vm543, %v556, 0.0
        %561 = vadd.xlane.f32.xlu0 %v560
        %v562 = vpop.xlane.xlu0 %561
        %v563 = vmul.f32 %v559, %v550
        %v564 = vmul.f32 %v562, %v550
        %v565 = vadd.f32 %v563, 1e-05
        %v566 = vadd.f32 %v564, 1e-05
        %v567 = vrsqrt.pop %v565
        %v568 = vrsqrt.pop %v566
        %v569 = vmul.f32 %v553, %v567
        %v570 = vmul.f32 %v554, %v568
        %v571 = vlaneseq
        %v572 = vshrl.u32 %v571, 7
        %v573 = vsub.s32 0, %v572
        %v574 = vrot.slane %v536, %v573
        %v575 = vmul.f32 %v569, %v574
        %v576 = vmul.f32 %v570, %v574
        %v577 = vlaneseq
        %v578 = vshrl.u32 %v577, 7
        %v579 = vsub.s32 1, %v578
        %v580 = vrot.slane %v536, %v579
        %v581 = vadd.f32 %v575, %v580
        %v582 = vadd.f32 %v576, %v580
        %v583 = vsel %vm543, %v537, 0.0
        %584 = vadd.xlane.f32.xlu0 %v583
        %v585 = vpop.xlane.xlu0 %584
        %v586 = vsel %vm543, %v538, 0.0
        %587 = vadd.xlane.f32.xlu0 %v586
        %v588 = vpop.xlane.xlu0 %587
        %v589 = vmul.f32 %v585, %v550
        %v590 = vmul.f32 %v588, %v550
        %v591 = vsub.f32 %v537, %v589
        %v592 = vsub.f32 %v538, %v590
        %v593 = vmul.f32 %v591, %v591
        %v594 = vmul.f32 %v592, %v592
        %v595 = vsel %vm543, %v593, 0.0
        %596 = vadd.xlane.f32.xlu0 %v595
        %v597 = vpop.xlane.xlu0 %596
        %v598 = vsel %vm543, %v594, 0.0
        %599 = vadd.xlane.f32.xlu0 %v598
        %v600 = vpop.xlane.xlu0 %599
        %v601 = vmul.f32 %v597, %v550
        %v602 = vmul.f32 %v600, %v550
        %v603 = vadd.f32 %v601, 1e-05
        %v604 = vadd.f32 %v602, 1e-05
        %v605 = vrsqrt.pop %v603
        %v606 = vrsqrt.pop %v604
        %v607 = vmul.f32 %v591, %v605
        %v608 = vmul.f32 %v592, %v606
        %v609 = vlaneseq
        %v610 = vshrl.u32 %v609, 7
        %v611 = vsub.s32 2, %v610
        %v612 = vrot.slane %v536, %v611
        %v613 = vmul.f32 %v607, %v612
        %v614 = vmul.f32 %v608, %v612
        %v615 = vlaneseq
        %v616 = vshrl.u32 %v615, 7
        %v617 = vsub.s32 3, %v616
        %v618 = vrot.slane %v536, %v617
        %v619 = vadd.f32 %v613, %v618
        %v620 = vadd.f32 %v614, %v618
        %v621 = vpack.c.bf16 %v581, %v581
        %v622 = vpack.c.bf16 %v582, %v582
        %vm623 = vcmask 257024
        %624 = vst.msk [vmem:[#allocation3] sm:$0xf] %vm623, %v621
        %625 = vst.msk [vmem:[#allocation3 + $0x8] sm:$0xf] %vm623, %v622
        %v626 = vpack.c.bf16 %v619, %v619
        %v627 = vpack.c.bf16 %v620, %v620
        %v630 = vrot.slane %v626, 4
        %v631 = vrot.slane %v627, 4
        %vm634 = vcmask 261124
        %635 = vst.msk [vmem:[#allocation3] sm:$0xf0] %vm634, %v630
        %636 = vst.msk [vmem:[#allocation3 + $0x8] sm:$0xf0] %vm634, %v631
        %v637 = vpack.c.bf16 %v620, %v619
        %v638 = vld [vmem:[#allocation3] sm:$0xff]
        %v639 = vld [vmem:[#allocation3 + $0x8] sm:$0xff]
        %v640 = vld [vmem:[%s501] sm:$0xf]
        %v641 = vld [vmem:[%s501 + $0x4] sm:$0xf]
        %v642 = vld [vmem:[%s501 + $0x8] sm:$0xf]
        %v643 = vld [vmem:[%s501 + $0xc] sm:$0xf]
        %v648 = vunpack.c.l.b16 %v640
        %v649 = vunpack.c.l.b16 %v641
        %v650 = vunpack.c.l.b16 %v642
        %v651 = vunpack.c.l.b16 %v643
        %v652 = vpack.c.b16 %v649, %v648
        %v653 = vpack.c.b16 %v651, %v650
        %v657 = vsel %vm543, %v637, 0
        %659 = vmatprep.subr.bf16.mxu0 0
        %660 = vmatpush1.bf16.msra.mxu0 %v652
        %661 = vmatprep.subr.bf16.mxu0 0
        %662 = vmatpush1.bf16.msra.mxu0 %v653
        %663 = vmatprep.subr.bf16.mxu0 0
        %664 = vmatpush1.bf16.msra.mxu0 0
        %665 = vmatprep.subr.bf16.mxu0 0
        %666 = vmatpush1.bf16.msra.mxu0 0
        %667 = vmatprep.subr.bf16.mxu0 0
        %668 = vmatpush1.bf16.msra.mxu0 0
        %669 = vmatprep.subr.bf16.mxu0 0
        %670 = vmatpush1.bf16.msra.mxu0 0
        %671 = vmatprep.subr.bf16.mxu0 0
        %672 = vmatpush1.bf16.msra.mxu0 0
        %673 = vmatprep.subr.bf16.mxu0 0
        %674 = vmatpush1.bf16.msra.mxu0 0
        %675 = vmatprep.subr.bf16.mxu0 0
        %676 = vmatpush1.bf16.msra.mxu0 0
        %677 = vmatprep.subr.bf16.mxu0 0
        %678 = vmatpush1.bf16.msra.mxu0 0
        %679 = vmatprep.subr.bf16.mxu0 0
        %680 = vmatpush1.bf16.msra.mxu0 0
        %681 = vmatprep.subr.bf16.mxu0 0
        %682 = vmatpush1.bf16.msra.mxu0 0
        %683 = vmatprep.subr.bf16.mxu0 0
        %684 = vmatpush1.bf16.msra.mxu0 0
        %685 = vmatprep.subr.bf16.mxu0 0
        %686 = vmatpush1.bf16.msra.mxu0 0
        %687 = vmatprep.subr.bf16.mxu0 0
        %688 = vmatpush1.bf16.msra.mxu0 0
        %689 = vmatprep.subr.bf16.mxu0 0
        %690 = vmatpush1.bf16.msra.mxu0 0
        %691 = vmatprep.mubr.bf16.mxu0 0
        %692 = vmatmul.mubr.bf16.gmra.mrb[0].mxu0 %v657
        %v693 = vpop.f32.mrb[0].mxu0
        %v694 = vadd.f32 0.0, %v693
        %v695 = vpop.f32.mrb[0].mxu0
        %v696 = vpop.f32.mrb[0].mxu0
        %v697 = vadd.f32 0.0, %v696
        %v698 = vpop.f32.mrb[0].mxu0
        %699 = vdwg.mxu0
        %v700 = vld [vmem:[%s506] sm:$0xf]
        %v701 = vld [vmem:[%s506 + $0x4] sm:$0xf]
        %v702 = vld [vmem:[%s506 + $0x8] sm:$0xf]
        %v703 = vld [vmem:[%s506 + $0xc] sm:$0xf]
        %v708 = vunpack.c.l.b16 %v700
        %v709 = vunpack.c.l.b16 %v701
        %v710 = vunpack.c.l.b16 %v702
        %v711 = vunpack.c.l.b16 %v703
        %v712 = vpack.c.b16 %v709, %v708
        %v713 = vpack.c.b16 %v711, %v710
        %v717 = vsel %vm543, %v638, 0
        %v720 = vsel %vm543, %v639, 0
        %722 = vmatprep.subr.bf16.mxu0 0
        %723 = vmatpush1.bf16.msra.mxu0 %v712
        %724 = vmatprep.subr.bf16.mxu0 0
        %725 = vmatpush1.bf16.msra.mxu0 %v713
        %726 = vmatprep.subr.bf16.mxu0 0
        %727 = vmatpush1.bf16.msra.mxu0 0
        %728 = vmatprep.subr.bf16.mxu0 0
        %729 = vmatpush1.bf16.msra.mxu0 0
        %730 = vmatprep.subr.bf16.mxu0 0
        %731 = vmatpush1.bf16.msra.mxu0 0
        %732 = vmatprep.subr.bf16.mxu0 0
        %733 = vmatpush1.bf16.msra.mxu0 0
        %734 = vmatprep.subr.bf16.mxu0 0
        %735 = vmatpush1.bf16.msra.mxu0 0
        %736 = vmatprep.subr.bf16.mxu0 0
        %737 = vmatpush1.bf16.msra.mxu0 0
        %738 = vmatprep.subr.bf16.mxu0 0
        %739 = vmatpush1.bf16.msra.mxu0 0
        %740 = vmatprep.subr.bf16.mxu0 0
        %741 = vmatpush1.bf16.msra.mxu0 0
        %742 = vmatprep.subr.bf16.mxu0 0
        %743 = vmatpush1.bf16.msra.mxu0 0
        %744 = vmatprep.subr.bf16.mxu0 0
        %745 = vmatpush1.bf16.msra.mxu0 0
        %746 = vmatprep.subr.bf16.mxu0 0
        %747 = vmatpush1.bf16.msra.mxu0 0
        %748 = vmatprep.subr.bf16.mxu0 0
        %749 = vmatpush1.bf16.msra.mxu0 0
        %750 = vmatprep.subr.bf16.mxu0 0
        %751 = vmatpush1.bf16.msra.mxu0 0
        %752 = vmatprep.subr.bf16.mxu0 0
        %753 = vmatpush1.bf16.msra.mxu0 0
        %754 = vmatprep.mubr.bf16.mxu0 0
        %755 = vmatmul.mubr.bf16.gmra.mrb[0].mxu0 %v717
        %v756 = vpop.f32.mrb[0].mxu0
        %v757 = vadd.f32 0.0, %v756
        %v758 = vpop.f32.mrb[0].mxu0
        %v759 = vpop.f32.mrb[0].mxu0
        %v760 = vadd.f32 0.0, %v759
        %v761 = vpop.f32.mrb[0].mxu0
        %762 = vmatprep.mubr.bf16.mxu0 0
        %763 = vmatmul.mubr.bf16.gmra.mrb[0].mxu0 %v720
        %v764 = vpop.f32.mrb[0].mxu0
        %v765 = vadd.f32 0.0, %v764
        %v766 = vpop.f32.mrb[0].mxu0
        %v767 = vpop.f32.mrb[0].mxu0
        %v768 = vadd.f32 0.0, %v767
        %v769 = vpop.f32.mrb[0].mxu0
        %770 = vdwg.mxu0
        %v771 = vpack.c.bf16 %v694, %v694
        %v772 = vpack.c.bf16 %v697, %v697
        %v773 = vpack.c.bf16 %v760, %v757
        %v774 = vpack.c.bf16 %v768, %v765
        %v775 = vld [vmem:[%s496] sm:$0x3]
        %v778 = vunpack.c.l.s4 1966171168
        %v779 = vunpack.c.0.s8 %v778
        %v780 = vlaneseq
        %v781 = vshrl.u32 %v780, 7
        %v782 = vsub.s32 %v779, %v781
        %v783 = vrot.slane %v775, %v782
        %v784 = vcombine.high %v783, %v783
        %v786 = vunpack.c.l.s4 1966171168
        %v787 = vunpack.c.0.s8 %v786
        %v788 = vlaneseq
        %v789 = vshrl.u32 %v788, 7
        %v790 = vsub.s32 %v787, %v789
        %v791 = vrot.slane %v783, %v790
        %v793 = vunpack.c.l.s4 1966171168
        %v794 = vunpack.c.0.s8 %v793
        %v795 = vlaneseq
        %v796 = vshrl.u32 %v795, 7
        %v797 = vsub.s32 %v794, %v796
        %v798 = vrot.slane %v784, %v797
        %v799 = vlaneseq
        %v800 = vshrl.u32 %v799, 7
        %v801 = vsub.s32 0, %v800
        %v802 = vrot.slane %v791, %v801
        %v803 = vlaneseq
        %v804 = vshrl.u32 %v803, 7
        %v805 = vsub.s32 0, %v804
        %v806 = vrot.slane %v798, %v805
        %vm809 = vcmask 130048
        %v811 = vsel %vm809, %v771, 0
        %v814 = vsel %vm809, %v773, 0
        %816 = vmatprep.subr.bf16.mxu0 0
        %817 = vmatpush1.bf16.xpose.msra.mxu0 %v814
        %818 = vmatprep.subr.bf16.mxu0 0
        %819 = vmatpush1.bf16.xpose.msra.mxu0 0
        %820 = vmatprep.subr.bf16.mxu0 0
        %821 = vmatpush1.bf16.xpose.msra.mxu0 0
        %822 = vmatprep.subr.bf16.mxu0 0
        %823 = vmatpush1.bf16.xpose.msra.mxu0 0
        %824 = vmatprep.subr.bf16.mxu0 0
        %825 = vmatpush1.bf16.xpose.msra.mxu0 0
        %826 = vmatprep.subr.bf16.mxu0 0
        %827 = vmatpush1.bf16.xpose.msra.mxu0 0
        %828 = vmatprep.subr.bf16.mxu0 0
        %829 = vmatpush1.bf16.xpose.msra.mxu0 0
        %830 = vmatprep.subr.bf16.mxu0 0
        %831 = vmatpush1.bf16.xpose.msra.mxu0 0
        %832 = vmatprep.subr.bf16.mxu0 0
        %833 = vmatpush1.bf16.xpose.msra.mxu0 0
        %834 = vmatprep.subr.bf16.mxu0 0
        %835 = vmatpush1.bf16.xpose.msra.mxu0 0
        %836 = vmatprep.subr.bf16.mxu0 0
        %837 = vmatpush1.bf16.xpose.msra.mxu0 0
        %838 = vmatprep.subr.bf16.mxu0 0
        %839 = vmatpush1.bf16.xpose.msra.mxu0 0
        %840 = vmatprep.subr.bf16.mxu0 0
        %841 = vmatpush1.bf16.xpose.msra.mxu0 0
        %842 = vmatprep.subr.bf16.mxu0 0
        %843 = vmatpush1.bf16.xpose.msra.mxu0 0
        %844 = vmatprep.subr.bf16.mxu0 0
        %845 = vmatpush1.bf16.xpose.msra.mxu0 0
        %846 = vmatprep.subr.bf16.mxu0 0
        %847 = vmatpush1.bf16.xpose.msra.mxu0 0
        %848 = vmatprep.mubr.bf16.mxu0 0
        %849 = vmatmul.mubr.bf16.gmra.mrb[0].mxu0 %v811
        %v850 = vpop.f32.mrb[0].mxu0
        %v851 = vadd.f32 %v802, %v850
        %v852 = vpop.f32.mrb[0].mxu0
        %v853 = vpop.f32.mrb[0].mxu0
        %v854 = vpop.f32.mrb[0].mxu0
        %855 = vdwg.mxu0
        %v857 = vsel %vm809, %v772, 0
        %v860 = vsel %vm809, %v774, 0
        %862 = vmatprep.subr.bf16.mxu0 0
        %863 = vmatpush1.bf16.xpose.msra.mxu0 %v860
        %864 = vmatprep.subr.bf16.mxu0 0
        %865 = vmatpush1.bf16.xpose.msra.mxu0 0
        %866 = vmatprep.subr.bf16.mxu0 0
        %867 = vmatpush1.bf16.xpose.msra.mxu0 0
        %868 = vmatprep.subr.bf16.mxu0 0
        %869 = vmatpush1.bf16.xpose.msra.mxu0 0
        %870 = vmatprep.subr.bf16.mxu0 0
        %871 = vmatpush1.bf16.xpose.msra.mxu0 0
        %872 = vmatprep.subr.bf16.mxu0 0
        %873 = vmatpush1.bf16.xpose.msra.mxu0 0
        %874 = vmatprep.subr.bf16.mxu0 0
        %875 = vmatpush1.bf16.xpose.msra.mxu0 0
        %876 = vmatprep.subr.bf16.mxu0 0
        %877 = vmatpush1.bf16.xpose.msra.mxu0 0
        %878 = vmatprep.subr.bf16.mxu0 0
        %879 = vmatpush1.bf16.xpose.msra.mxu0 0
        %880 = vmatprep.subr.bf16.mxu0 0
        %881 = vmatpush1.bf16.xpose.msra.mxu0 0
        %882 = vmatprep.subr.bf16.mxu0 0
        %883 = vmatpush1.bf16.xpose.msra.mxu0 0
        %884 = vmatprep.subr.bf16.mxu0 0
        %885 = vmatpush1.bf16.xpose.msra.mxu0 0
        %886 = vmatprep.subr.bf16.mxu0 0
        %887 = vmatpush1.bf16.xpose.msra.mxu0 0
        %888 = vmatprep.subr.bf16.mxu0 0
        %889 = vmatpush1.bf16.xpose.msra.mxu0 0
        %890 = vmatprep.subr.bf16.mxu0 0
        %891 = vmatpush1.bf16.xpose.msra.mxu0 0
        %892 = vmatprep.subr.bf16.mxu0 0
        %893 = vmatpush1.bf16.xpose.msra.mxu0 0
        %894 = vmatprep.mubr.bf16.mxu0 0
        %895 = vmatmul.mubr.bf16.gmra.mrb[0].mxu0 %v857
        %v896 = vpop.f32.mrb[0].mxu0
        %v897 = vadd.f32 %v806, %v896
        %v898 = vpop.f32.mrb[0].mxu0
        %v899 = vpop.f32.mrb[0].mxu0
        %v900 = vpop.f32.mrb[0].mxu0
        %901 = vdwg.mxu0
        %v902 = vsel %vm809, %v851, -inf
        %903 = vmax.xlane.f32.xlu0 %v902
        %v904 = vpop.xlane.xlu0 %903
        %v905 = vsel %vm809, %v897, -inf
        %906 = vmax.xlane.f32.xlu0 %v905
        %v907 = vpop.xlane.xlu0 %906
        %v908 = vsub.f32 %v851, %v904
        %v909 = vsub.f32 %v897, %v907
        %v910 = vmul.f32 %v908, 1.442695
        %v911 = vpow.pop %v910
        %v912 = vmul.f32 %v909, 1.442695
        %v913 = vpow.pop %v912
        %v914 = vsel %vm809, %v911, 0.0
        %915 = vadd.xlane.f32.xlu0 %v914
        %v916 = vpop.xlane.xlu0 %915
        %v917 = vsel %vm809, %v913, 0.0
        %918 = vadd.xlane.f32.xlu0 %v917
        %v919 = vpop.xlane.xlu0 %918
        %v920 = vrcp.pop %v916
        %v921 = vrcp.pop %v919
        %v922 = vmul.f32 %v911, %v920
        %v923 = vmul.f32 %v913, %v921
        %v924 = vpack.c.bf16 %v922, %v922
        %v925 = vpack.c.bf16 %v923, %v923
        %927 = vrot.lane.b32.xlu0 %v773, 64
        %v928 = vpop.permute.xlu0 %927
        %v931 = vsel %vm809, %v924, 0
        %933 = vmatprep.subr.bf16.mxu0 0
        %934 = vmatpush1.bf16.msra.mxu0 %v928
        %935 = vmatprep.subr.bf16.mxu0 0
        %936 = vmatpush1.bf16.msra.mxu0 0
        %937 = vmatprep.subr.bf16.mxu0 0
        %938 = vmatpush1.bf16.msra.mxu0 0
        %939 = vmatprep.subr.bf16.mxu0 0
        %940 = vmatpush1.bf16.msra.mxu0 0
        %941 = vmatprep.subr.bf16.mxu0 0
        %942 = vmatpush1.bf16.msra.mxu0 0
        %943 = vmatprep.subr.bf16.mxu0 0
        %944 = vmatpush1.bf16.msra.mxu0 0
        %945 = vmatprep.subr.bf16.mxu0 0
        %946 = vmatpush1.bf16.msra.mxu0 0
        %947 = vmatprep.subr.bf16.mxu0 0
        %948 = vmatpush1.bf16.msra.mxu0 0
        %949 = vmatprep.subr.bf16.mxu0 0
        %950 = vmatpush1.bf16.msra.mxu0 0
        %951 = vmatprep.subr.bf16.mxu0 0
        %952 = vmatpush1.bf16.msra.mxu0 0
        %953 = vmatprep.subr.bf16.mxu0 0
        %954 = vmatpush1.bf16.msra.mxu0 0
        %955 = vmatprep.subr.bf16.mxu0 0
        %956 = vmatpush1.bf16.msra.mxu0 0
        %957 = vmatprep.subr.bf16.mxu0 0
        %958 = vmatpush1.bf16.msra.mxu0 0
        %959 = vmatprep.subr.bf16.mxu0 0
        %960 = vmatpush1.bf16.msra.mxu0 0
        %961 = vmatprep.subr.bf16.mxu0 0
        %962 = vmatpush1.bf16.msra.mxu0 0
        %963 = vmatprep.subr.bf16.mxu0 0
        %964 = vmatpush1.bf16.msra.mxu0 0
        %965 = vmatprep.mubr.bf16.mxu0 0
        %966 = vmatmul.mubr.bf16.gmra.mrb[0].mxu0 %v931
        %v967 = vpop.f32.mrb[0].mxu0
        %v968 = vadd.f32 0.0, %v967
        %v969 = vpop.f32.mrb[0].mxu0
        %v970 = vpop.f32.mrb[0].mxu0
        %v971 = vpop.f32.mrb[0].mxu0
        %972 = vdwg.mxu0
        %974 = vrot.lane.b32.xlu0 %v774, 64
        %v975 = vpop.permute.xlu0 %974
        %v978 = vsel %vm809, %v925, 0
        %980 = vmatprep.subr.bf16.mxu0 0
        %981 = vmatpush1.bf16.msra.mxu0 %v975
        %982 = vmatprep.subr.bf16.mxu0 0
        %983 = vmatpush1.bf16.msra.mxu0 0
        %984 = vmatprep.subr.bf16.mxu0 0
        %985 = vmatpush1.bf16.msra.mxu0 0
        %986 = vmatprep.subr.bf16.mxu0 0
        %987 = vmatpush1.bf16.msra.mxu0 0
        %988 = vmatprep.subr.bf16.mxu0 0
        %989 = vmatpush1.bf16.msra.mxu0 0
        %990 = vmatprep.subr.bf16.mxu0 0
        %991 = vmatpush1.bf16.msra.mxu0 0
        %992 = vmatprep.subr.bf16.mxu0 0
        %993 = vmatpush1.bf16.msra.mxu0 0
        %994 = vmatprep.subr.bf16.mxu0 0
        %995 = vmatpush1.bf16.msra.mxu0 0
        %996 = vmatprep.subr.bf16.mxu0 0
        %997 = vmatpush1.bf16.msra.mxu0 0
        %998 = vmatprep.subr.bf16.mxu0 0
        %999 = vmatpush1.bf16.msra.mxu0 0
        %1000 = vmatprep.subr.bf16.mxu0 0
        %1001 = vmatpush1.bf16.msra.mxu0 0
        %1002 = vmatprep.subr.bf16.mxu0 0
        %1003 = vmatpush1.bf16.msra.mxu0 0
        %1004 = vmatprep.subr.bf16.mxu0 0
        %1005 = vmatpush1.bf16.msra.mxu0 0
        %1006 = vmatprep.subr.bf16.mxu0 0
        %1007 = vmatpush1.bf16.msra.mxu0 0
        %1008 = vmatprep.subr.bf16.mxu0 0
        %1009 = vmatpush1.bf16.msra.mxu0 0
        %1010 = vmatprep.subr.bf16.mxu0 0
        %1011 = vmatpush1.bf16.msra.mxu0 0
        %1012 = vmatprep.mubr.bf16.mxu0 0
        %1013 = vmatmul.mubr.bf16.gmra.mrb[0].mxu0 %v978
        %v1014 = vpop.f32.mrb[0].mxu0
        %v1015 = vadd.f32 0.0, %v1014
        %v1016 = vpop.f32.mrb[0].mxu0
        %v1017 = vpop.f32.mrb[0].mxu0
        %v1018 = vpop.f32.mrb[0].mxu0
        %1019 = vdwg.mxu0
        %v1020 = vpack.c.bf16 %v968, %v968
        %v1021 = vpack.c.bf16 %v1015, %v1015
        %vm1022 = vcmask 125952
        %1023 = vst.msk [vmem:[#allocation4] sm:$0xf] %vm1022, %v1020
        %1024 = vst.msk [vmem:[#allocation4 + $0x4] sm:$0xf] %vm1022, %v1021
        %1026 = vrot.lane.b32.xlu0 %v771, 112
        %v1027 = vpop.permute.xlu0 %1026
        %1028 = vrot.lane.b32.xlu0 %v773, 112
        %v1029 = vpop.permute.xlu0 %1028
        %v1031 = vsel %vm809, %v1027, 0
        %v1034 = vsel %vm809, %v1029, 0
        %1036 = vmatprep.subr.bf16.mxu0 0
        %1037 = vmatpush1.bf16.xpose.msra.mxu0 %v1034
        %1038 = vmatprep.subr.bf16.mxu0 0
        %1039 = vmatpush1.bf16.xpose.msra.mxu0 0
        %1040 = vmatprep.subr.bf16.mxu0 0
        %1041 = vmatpush1.bf16.xpose.msra.mxu0 0
        %1042 = vmatprep.subr.bf16.mxu0 0
        %1043 = vmatpush1.bf16.xpose.msra.mxu0 0
        %1044 = vmatprep.subr.bf16.mxu0 0
        %1045 = vmatpush1.bf16.xpose.msra.mxu0 0
        %1046 = vmatprep.subr.bf16.mxu0 0
        %1047 = vmatpush1.bf16.xpose.msra.mxu0 0
        %1048 = vmatprep.subr.bf16.mxu0 0
        %1049 = vmatpush1.bf16.xpose.msra.mxu0 0
        %1050 = vmatprep.subr.bf16.mxu0 0
        %1051 = vmatpush1.bf16.xpose.msra.mxu0 0
        %1052 = vmatprep.subr.bf16.mxu0 0
        %1053 = vmatpush1.bf16.xpose.msra.mxu0 0
        %1054 = vmatprep.subr.bf16.mxu0 0
        %1055 = vmatpush1.bf16.xpose.msra.mxu0 0
        %1056 = vmatprep.subr.bf16.mxu0 0
        %1057 = vmatpush1.bf16.xpose.msra.mxu0 0
        %1058 = vmatprep.subr.bf16.mxu0 0
        %1059 = vmatpush1.bf16.xpose.msra.mxu0 0
        %1060 = vmatprep.subr.bf16.mxu0 0
        %1061 = vmatpush1.bf16.xpose.msra.mxu0 0
        %1062 = vmatprep.subr.bf16.mxu0 0
        %1063 = vmatpush1.bf16.xpose.msra.mxu0 0
        %1064 = vmatprep.subr.bf16.mxu0 0
        %1065 = vmatpush1.bf16.xpose.msra.mxu0 0
        %1066 = vmatprep.subr.bf16.mxu0 0
        %1067 = vmatpush1.bf16.xpose.msra.mxu0 0
        %1068 = vmatprep.mubr.bf16.mxu0 0
        %1069 = vmatmul.mubr.bf16.gmra.mrb[0].mxu0 %v1031
        %v1070 = vpop.f32.mrb[0].mxu0
        %v1071 = vadd.f32 %v802, %v1070
        %v1072 = vpop.f32.mrb[0].mxu0
        %v1073 = vpop.f32.mrb[0].mxu0
        %v1074 = vpop.f32.mrb[0].mxu0
        %1075 = vdwg.mxu0
        %1077 = vrot.lane.b32.xlu0 %v772, 112
        %v1078 = vpop.permute.xlu0 %1077
        %1079 = vrot.lane.b32.xlu0 %v774, 112
        %v1080 = vpop.permute.xlu0 %1079
        %v1082 = vsel %vm809, %v1078, 0
        %v1085 = vsel %vm809, %v1080, 0
        %1087 = vmatprep.subr.bf16.mxu0 0
        %1088 = vmatpush1.bf16.xpose.msra.mxu0 %v1085
        %1089 = vmatprep.subr.bf16.mxu0 0
        %1090 = vmatpush1.bf16.xpose.msra.mxu0 0
        %1091 = vmatprep.subr.bf16.mxu0 0
        %1092 = vmatpush1.bf16.xpose.msra.mxu0 0
        %1093 = vmatprep.subr.bf16.mxu0 0
        %1094 = vmatpush1.bf16.xpose.msra.mxu0 0
        %1095 = vmatprep.subr.bf16.mxu0 0
        %1096 = vmatpush1.bf16.xpose.msra.mxu0 0
        %1097 = vmatprep.subr.bf16.mxu0 0
        %1098 = vmatpush1.bf16.xpose.msra.mxu0 0
        %1099 = vmatprep.subr.bf16.mxu0 0
        %1100 = vmatpush1.bf16.xpose.msra.mxu0 0
        %1101 = vmatprep.subr.bf16.mxu0 0
        %1102 = vmatpush1.bf16.xpose.msra.mxu0 0
        %1103 = vmatprep.subr.bf16.mxu0 0
        %1104 = vmatpush1.bf16.xpose.msra.mxu0 0
        %1105 = vmatprep.subr.bf16.mxu0 0
        %1106 = vmatpush1.bf16.xpose.msra.mxu0 0
        %1107 = vmatprep.subr.bf16.mxu0 0
        %1108 = vmatpush1.bf16.xpose.msra.mxu0 0
        %1109 = vmatprep.subr.bf16.mxu0 0
        %1110 = vmatpush1.bf16.xpose.msra.mxu0 0
        %1111 = vmatprep.subr.bf16.mxu0 0
        %1112 = vmatpush1.bf16.xpose.msra.mxu0 0
        %1113 = vmatprep.subr.bf16.mxu0 0
        %1114 = vmatpush1.bf16.xpose.msra.mxu0 0
        %1115 = vmatprep.subr.bf16.mxu0 0
        %1116 = vmatpush1.bf16.xpose.msra.mxu0 0
        %1117 = vmatprep.subr.bf16.mxu0 0
        %1118 = vmatpush1.bf16.xpose.msra.mxu0 0
        %1119 = vmatprep.mubr.bf16.mxu0 0
        %1120 = vmatmul.mubr.bf16.gmra.mrb[0].mxu0 %v1082
        %v1121 = vpop.f32.mrb[0].mxu0
        %v1122 = vadd.f32 %v806, %v1121
        %v1123 = vpop.f32.mrb[0].mxu0
        %v1124 = vpop.f32.mrb[0].mxu0
        %v1125 = vpop.f32.mrb[0].mxu0
        %1126 = vdwg.mxu0
        %v1127 = vsel %vm809, %v1071, -inf
        %1128 = vmax.xlane.f32.xlu0 %v1127
        %v1129 = vpop.xlane.xlu0 %1128
        %v1130 = vsel %vm809, %v1122, -inf
        %1131 = vmax.xlane.f32.xlu0 %v1130
        %v1132 = vpop.xlane.xlu0 %1131
        %v1133 = vsub.f32 %v1071, %v1129
        %v1134 = vsub.f32 %v1122, %v1132
        %v1135 = vmul.f32 %v1133, 1.442695
        %v1136 = vpow.pop %v1135
        %v1137 = vmul.f32 %v1134, 1.442695
        %v1138 = vpow.pop %v1137
        %v1139 = vsel %vm809, %v1136, 0.0
        %1140 = vadd.xlane.f32.xlu0 %v1139
        %v1141 = vpop.xlane.xlu0 %1140
        %v1142 = vsel %vm809, %v1138, 0.0
        %1143 = vadd.xlane.f32.xlu0 %v1142
        %v1144 = vpop.xlane.xlu0 %1143
        %v1145 = vrcp.pop %v1141
        %v1146 = vrcp.pop %v1144
        %v1147 = vmul.f32 %v1136, %v1145
        %v1148 = vmul.f32 %v1138, %v1146
        %v1149 = vpack.c.bf16 %v1147, %v1147
        %v1150 = vpack.c.bf16 %v1148, %v1148
        %1151 = vrot.lane.b32.xlu0 %v773, 48
        %v1152 = vpop.permute.xlu0 %1151
        %v1155 = vsel %vm809, %v1149, 0
        %1157 = vmatprep.subr.bf16.mxu0 0
        %1158 = vmatpush1.bf16.msra.mxu0 %v1152
        %1159 = vmatprep.subr.bf16.mxu0 0
        %1160 = vmatpush1.bf16.msra.mxu0 0
        %1161 = vmatprep.subr.bf16.mxu0 0
        %1162 = vmatpush1.bf16.msra.mxu0 0
        %1163 = vmatprep.subr.bf16.mxu0 0
        %1164 = vmatpush1.bf16.msra.mxu0 0
        %1165 = vmatprep.subr.bf16.mxu0 0
        %1166 = vmatpush1.bf16.msra.mxu0 0
        %1167 = vmatprep.subr.bf16.mxu0 0
        %1168 = vmatpush1.bf16.msra.mxu0 0
        %1169 = vmatprep.subr.bf16.mxu0 0
        %1170 = vmatpush1.bf16.msra.mxu0 0
        %1171 = vmatprep.subr.bf16.mxu0 0
        %1172 = vmatpush1.bf16.msra.mxu0 0
        %1173 = vmatprep.subr.bf16.mxu0 0
        %1174 = vmatpush1.bf16.msra.mxu0 0
        %1175 = vmatprep.subr.bf16.mxu0 0
        %1176 = vmatpush1.bf16.msra.mxu0 0
        %1177 = vmatprep.subr.bf16.mxu0 0
        %1178 = vmatpush1.bf16.msra.mxu0 0
        %1179 = vmatprep.subr.bf16.mxu0 0
        %1180 = vmatpush1.bf16.msra.mxu0 0
        %1181 = vmatprep.subr.bf16.mxu0 0
        %1182 = vmatpush1.bf16.msra.mxu0 0
        %1183 = vmatprep.subr.bf16.mxu0 0
        %1184 = vmatpush1.bf16.msra.mxu0 0
        %1185 = vmatprep.subr.bf16.mxu0 0
        %1186 = vmatpush1.bf16.msra.mxu0 0
        %1187 = vmatprep.subr.bf16.mxu0 0
        %1188 = vmatpush1.bf16.msra.mxu0 0
        %1189 = vmatprep.mubr.bf16.mxu0 0
        %1190 = vmatmul.mubr.bf16.gmra.mrb[0].mxu0 %v1155
        %v1191 = vpop.f32.mrb[0].mxu0
        %v1192 = vadd.f32 0.0, %v1191
        %v1193 = vpop.f32.mrb[0].mxu0
        %v1194 = vpop.f32.mrb[0].mxu0
        %v1195 = vpop.f32.mrb[0].mxu0
        %1196 = vdwg.mxu0
        %1197 = vrot.lane.b32.xlu0 %v774, 48
        %v1198 = vpop.permute.xlu0 %1197
        %v1201 = vsel %vm809, %v1150, 0
        %1203 = vmatprep.subr.bf16.mxu0 0
        %1204 = vmatpush1.bf16.msra.mxu0 %v1198
        %1205 = vmatprep.subr.bf16.mxu0 0
        %1206 = vmatpush1.bf16.msra.mxu0 0
        %1207 = vmatprep.subr.bf16.mxu0 0
        %1208 = vmatpush1.bf16.msra.mxu0 0
        %1209 = vmatprep.subr.bf16.mxu0 0
        %1210 = vmatpush1.bf16.msra.mxu0 0
        %1211 = vmatprep.subr.bf16.mxu0 0
        %1212 = vmatpush1.bf16.msra.mxu0 0
        %1213 = vmatprep.subr.bf16.mxu0 0
        %1214 = vmatpush1.bf16.msra.mxu0 0
        %1215 = vmatprep.subr.bf16.mxu0 0
        %1216 = vmatpush1.bf16.msra.mxu0 0
        %1217 = vmatprep.subr.bf16.mxu0 0
        %1218 = vmatpush1.bf16.msra.mxu0 0
        %1219 = vmatprep.subr.bf16.mxu0 0
        %1220 = vmatpush1.bf16.msra.mxu0 0
        %1221 = vmatprep.subr.bf16.mxu0 0
        %1222 = vmatpush1.bf16.msra.mxu0 0
        %1223 = vmatprep.subr.bf16.mxu0 0
        %1224 = vmatpush1.bf16.msra.mxu0 0
        %1225 = vmatprep.subr.bf16.mxu0 0
        %1226 = vmatpush1.bf16.msra.mxu0 0
        %1227 = vmatprep.subr.bf16.mxu0 0
        %1228 = vmatpush1.bf16.msra.mxu0 0
        %1229 = vmatprep.subr.bf16.mxu0 0
        %1230 = vmatpush1.bf16.msra.mxu0 0
        %1231 = vmatprep.subr.bf16.mxu0 0
        %1232 = vmatpush1.bf16.msra.mxu0 0
        %1233 = vmatprep.subr.bf16.mxu0 0
        %1234 = vmatpush1.bf16.msra.mxu0 0
        %1235 = vmatprep.mubr.bf16.mxu0 0
        %1236 = vmatmul.mubr.bf16.gmra.mrb[0].mxu0 %v1201
        %v1237 = vpop.f32.mrb[0].mxu0
        %v1238 = vadd.f32 0.0, %v1237
        %v1239 = vpop.f32.mrb[0].mxu0
        %v1240 = vpop.f32.mrb[0].mxu0
        %v1241 = vpop.f32.mrb[0].mxu0
        %1242 = vdwg.mxu0
        %v1243 = vpack.c.bf16 %v1192, %v1192
        %v1244 = vpack.c.bf16 %v1238, %v1238
        %v1247 = vunpack.c.l.b16 %v1243
        %v1248 = vunpack.c.l.b16 %v1244
        %v1249 = vpack.c.b16 %v1247, %v1247
        %v1250 = vpack.c.b16 %v1248, %v1248
        %1251 = vrot.lane.b32.xlu0 %v1249, 16
        %v1252 = vpop.permute.xlu0 %1251
        %1253 = vrot.lane.b32.xlu0 %v1250, 16
        %v1254 = vpop.permute.xlu0 %1253
        %vm1257 = vcmask 257152
        %1258 = vst.msk [vmem:[#allocation4] sm:$0xf] %vm1257, %v1252
        %1259 = vst.msk [vmem:[#allocation4 + $0x4] sm:$0xf] %vm1257, %v1254
        %1260 = vrot.lane.b32.xlu0 %v771, 96
        %v1261 = vpop.permute.xlu0 %1260
        %1262 = vrot.lane.b32.xlu0 %v773, 96
        %v1263 = vpop.permute.xlu0 %1262
        %v1265 = vsel %vm809, %v1261, 0
        %v1268 = vsel %vm809, %v1263, 0
        %1270 = vmatprep.subr.bf16.mxu0 0
        %1271 = vmatpush1.bf16.xpose.msra.mxu0 %v1268
        %1272 = vmatprep.subr.bf16.mxu0 0
        %1273 = vmatpush1.bf16.xpose.msra.mxu0 0
        %1274 = vmatprep.subr.bf16.mxu0 0
        %1275 = vmatpush1.bf16.xpose.msra.mxu0 0
        %1276 = vmatprep.subr.bf16.mxu0 0
        %1277 = vmatpush1.bf16.xpose.msra.mxu0 0
        %1278 = vmatprep.subr.bf16.mxu0 0
        %1279 = vmatpush1.bf16.xpose.msra.mxu0 0
        %1280 = vmatprep.subr.bf16.mxu0 0
        %1281 = vmatpush1.bf16.xpose.msra.mxu0 0
        %1282 = vmatprep.subr.bf16.mxu0 0
        %1283 = vmatpush1.bf16.xpose.msra.mxu0 0
        %1284 = vmatprep.subr.bf16.mxu0 0
        %1285 = vmatpush1.bf16.xpose.msra.mxu0 0
        %1286 = vmatprep.subr.bf16.mxu0 0
        %1287 = vmatpush1.bf16.xpose.msra.mxu0 0
        %1288 = vmatprep.subr.bf16.mxu0 0
        %1289 = vmatpush1.bf16.xpose.msra.mxu0 0
        %1290 = vmatprep.subr.bf16.mxu0 0
        %1291 = vmatpush1.bf16.xpose.msra.mxu0 0
        %1292 = vmatprep.subr.bf16.mxu0 0
        %1293 = vmatpush1.bf16.xpose.msra.mxu0 0
        %1294 = vmatprep.subr.bf16.mxu0 0
        %1295 = vmatpush1.bf16.xpose.msra.mxu0 0
        %1296 = vmatprep.subr.bf16.mxu0 0
        %1297 = vmatpush1.bf16.xpose.msra.mxu0 0
        %1298 = vmatprep.subr.bf16.mxu0 0
        %1299 = vmatpush1.bf16.xpose.msra.mxu0 0
        %1300 = vmatprep.subr.bf16.mxu0 0
        %1301 = vmatpush1.bf16.xpose.msra.mxu0 0
        %1302 = vmatprep.mubr.bf16.mxu0 0
        %1303 = vmatmul.mubr.bf16.gmra.mrb[0].mxu0 %v1265
        %v1304 = vpop.f32.mrb[0].mxu0
        %v1305 = vadd.f32 %v802, %v1304
        %v1306 = vpop.f32.mrb[0].mxu0
        %v1307 = vpop.f32.mrb[0].mxu0
        %v1308 = vpop.f32.mrb[0].mxu0
        %1309 = vdwg.mxu0
        %1310 = vrot.lane.b32.xlu0 %v772, 96
        %v1311 = vpop.permute.xlu0 %1310
        %1312 = vrot.lane.b32.xlu0 %v774, 96
        %v1313 = vpop.permute.xlu0 %1312
        %v1315 = vsel %vm809, %v1311, 0
        %v1318 = vsel %vm809, %v1313, 0
        %1320 = vmatprep.subr.bf16.mxu0 0
        %1321 = vmatpush1.bf16.xpose.msra.mxu0 %v1318
        %1322 = vmatprep.subr.bf16.mxu0 0
        %1323 = vmatpush1.bf16.xpose.msra.mxu0 0
        %1324 = vmatprep.subr.bf16.mxu0 0
        %1325 = vmatpush1.bf16.xpose.msra.mxu0 0
        %1326 = vmatprep.subr.bf16.mxu0 0
        %1327 = vmatpush1.bf16.xpose.msra.mxu0 0
        %1328 = vmatprep.subr.bf16.mxu0 0
        %1329 = vmatpush1.bf16.xpose.msra.mxu0 0
        %1330 = vmatprep.subr.bf16.mxu0 0
        %1331 = vmatpush1.bf16.xpose.msra.mxu0 0
        %1332 = vmatprep.subr.bf16.mxu0 0
        %1333 = vmatpush1.bf16.xpose.msra.mxu0 0
        %1334 = vmatprep.subr.bf16.mxu0 0
        %1335 = vmatpush1.bf16.xpose.msra.mxu0 0
        %1336 = vmatprep.subr.bf16.mxu0 0
        %1337 = vmatpush1.bf16.xpose.msra.mxu0 0
        %1338 = vmatprep.subr.bf16.mxu0 0
        %1339 = vmatpush1.bf16.xpose.msra.mxu0 0
        %1340 = vmatprep.subr.bf16.mxu0 0
        %1341 = vmatpush1.bf16.xpose.msra.mxu0 0
        %1342 = vmatprep.subr.bf16.mxu0 0
        %1343 = vmatpush1.bf16.xpose.msra.mxu0 0
        %1344 = vmatprep.subr.bf16.mxu0 0
        %1345 = vmatpush1.bf16.xpose.msra.mxu0 0
        %1346 = vmatprep.subr.bf16.mxu0 0
        %1347 = vmatpush1.bf16.xpose.msra.mxu0 0
        %1348 = vmatprep.subr.bf16.mxu0 0
        %1349 = vmatpush1.bf16.xpose.msra.mxu0 0
        %1350 = vmatprep.subr.bf16.mxu0 0
        %1351 = vmatpush1.bf16.xpose.msra.mxu0 0
        %1352 = vmatprep.mubr.bf16.mxu0 0
        %1353 = vmatmul.mubr.bf16.gmra.mrb[0].mxu0 %v1315
        %v1354 = vpop.f32.mrb[0].mxu0
        %v1355 = vadd.f32 %v806, %v1354
        %v1356 = vpop.f32.mrb[0].mxu0
        %v1357 = vpop.f32.mrb[0].mxu0
        %v1358 = vpop.f32.mrb[0].mxu0
        %1359 = vdwg.mxu0
        %v1360 = vsel %vm809, %v1305, -inf
        %1361 = vmax.xlane.f32.xlu0 %v1360
        %v1362 = vpop.xlane.xlu0 %1361
        %v1363 = vsel %vm809, %v1355, -inf
        %1364 = vmax.xlane.f32.xlu0 %v1363
        %v1365 = vpop.xlane.xlu0 %1364
        %v1366 = vsub.f32 %v1305, %v1362
        %v1367 = vsub.f32 %v1355, %v1365
        %v1368 = vmul.f32 %v1366, 1.442695
        %v1369 = vpow.pop %v1368
        %v1370 = vmul.f32 %v1367, 1.442695
        %v1371 = vpow.pop %v1370
        %v1372 = vsel %vm809, %v1369, 0.0
        %1373 = vadd.xlane.f32.xlu0 %v1372
        %v1374 = vpop.xlane.xlu0 %1373
        %v1375 = vsel %vm809, %v1371, 0.0
        %1376 = vadd.xlane.f32.xlu0 %v1375
        %v1377 = vpop.xlane.xlu0 %1376
        %v1378 = vrcp.pop %v1374
        %v1379 = vrcp.pop %v1377
        %v1380 = vmul.f32 %v1369, %v1378
        %v1381 = vmul.f32 %v1371, %v1379
        %v1382 = vpack.c.bf16 %v1380, %v1380
        %v1383 = vpack.c.bf16 %v1381, %v1381
        %1384 = vrot.lane.b32.xlu0 %v773, 32
        %v1385 = vpop.permute.xlu0 %1384
        %v1388 = vsel %vm809, %v1382, 0
        %1390 = vmatprep.subr.bf16.mxu0 0
        %1391 = vmatpush1.bf16.msra.mxu0 %v1385
        %1392 = vmatprep.subr.bf16.mxu0 0
        %1393 = vmatpush1.bf16.msra.mxu0 0
        %1394 = vmatprep.subr.bf16.mxu0 0
        %1395 = vmatpush1.bf16.msra.mxu0 0
        %1396 = vmatprep.subr.bf16.mxu0 0
        %1397 = vmatpush1.bf16.msra.mxu0 0
        %1398 = vmatprep.subr.bf16.mxu0 0
        %1399 = vmatpush1.bf16.msra.mxu0 0
        %1400 = vmatprep.subr.bf16.mxu0 0
        %1401 = vmatpush1.bf16.msra.mxu0 0
        %1402 = vmatprep.subr.bf16.mxu0 0
        %1403 = vmatpush1.bf16.msra.mxu0 0
        %1404 = vmatprep.subr.bf16.mxu0 0
        %1405 = vmatpush1.bf16.msra.mxu0 0
        %1406 = vmatprep.subr.bf16.mxu0 0
        %1407 = vmatpush1.bf16.msra.mxu0 0
        %1408 = vmatprep.subr.bf16.mxu0 0
        %1409 = vmatpush1.bf16.msra.mxu0 0
        %1410 = vmatprep.subr.bf16.mxu0 0
        %1411 = vmatpush1.bf16.msra.mxu0 0
        %1412 = vmatprep.subr.bf16.mxu0 0
        %1413 = vmatpush1.bf16.msra.mxu0 0
        %1414 = vmatprep.subr.bf16.mxu0 0
        %1415 = vmatpush1.bf16.msra.mxu0 0
        %1416 = vmatprep.subr.bf16.mxu0 0
        %1417 = vmatpush1.bf16.msra.mxu0 0
        %1418 = vmatprep.subr.bf16.mxu0 0
        %1419 = vmatpush1.bf16.msra.mxu0 0
        %1420 = vmatprep.subr.bf16.mxu0 0
        %1421 = vmatpush1.bf16.msra.mxu0 0
        %1422 = vmatprep.mubr.bf16.mxu0 0
        %1423 = vmatmul.mubr.bf16.gmra.mrb[0].mxu0 %v1388
        %v1424 = vpop.f32.mrb[0].mxu0
        %v1425 = vadd.f32 0.0, %v1424
        %v1426 = vpop.f32.mrb[0].mxu0
        %v1427 = vpop.f32.mrb[0].mxu0
        %v1428 = vpop.f32.mrb[0].mxu0
        %1429 = vdwg.mxu0
        %1430 = vrot.lane.b32.xlu0 %v774, 32
        %v1431 = vpop.permute.xlu0 %1430
        %v1434 = vsel %vm809, %v1383, 0
        %1436 = vmatprep.subr.bf16.mxu0 0
        %1437 = vmatpush1.bf16.msra.mxu0 %v1431
        %1438 = vmatprep.subr.bf16.mxu0 0
        %1439 = vmatpush1.bf16.msra.mxu0 0
        %1440 = vmatprep.subr.bf16.mxu0 0
        %1441 = vmatpush1.bf16.msra.mxu0 0
        %1442 = vmatprep.subr.bf16.mxu0 0
        %1443 = vmatpush1.bf16.msra.mxu0 0
        %1444 = vmatprep.subr.bf16.mxu0 0
        %1445 = vmatpush1.bf16.msra.mxu0 0
        %1446 = vmatprep.subr.bf16.mxu0 0
        %1447 = vmatpush1.bf16.msra.mxu0 0
        %1448 = vmatprep.subr.bf16.mxu0 0
        %1449 = vmatpush1.bf16.msra.mxu0 0
        %1450 = vmatprep.subr.bf16.mxu0 0
        %1451 = vmatpush1.bf16.msra.mxu0 0
        %1452 = vmatprep.subr.bf16.mxu0 0
        %1453 = vmatpush1.bf16.msra.mxu0 0
        %1454 = vmatprep.subr.bf16.mxu0 0
        %1455 = vmatpush1.bf16.msra.mxu0 0
        %1456 = vmatprep.subr.bf16.mxu0 0
        %1457 = vmatpush1.bf16.msra.mxu0 0
        %1458 = vmatprep.subr.bf16.mxu0 0
        %1459 = vmatpush1.bf16.msra.mxu0 0
        %1460 = vmatprep.subr.bf16.mxu0 0
        %1461 = vmatpush1.bf16.msra.mxu0 0
        %1462 = vmatprep.subr.bf16.mxu0 0
        %1463 = vmatpush1.bf16.msra.mxu0 0
        %1464 = vmatprep.subr.bf16.mxu0 0
        %1465 = vmatpush1.bf16.msra.mxu0 0
        %1466 = vmatprep.subr.bf16.mxu0 0
        %1467 = vmatpush1.bf16.msra.mxu0 0
        %1468 = vmatprep.mubr.bf16.mxu0 0
        %1469 = vmatmul.mubr.bf16.gmra.mrb[0].mxu0 %v1434
        %v1470 = vpop.f32.mrb[0].mxu0
        %v1471 = vadd.f32 0.0, %v1470
        %v1472 = vpop.f32.mrb[0].mxu0
        %v1473 = vpop.f32.mrb[0].mxu0
        %v1474 = vpop.f32.mrb[0].mxu0
        %1475 = vdwg.mxu0
        %v1476 = vpack.c.bf16 %v1425, %v1425
        %v1477 = vpack.c.bf16 %v1471, %v1471
        %v1480 = vunpack.c.l.b16 %v1476
        %v1481 = vunpack.c.l.b16 %v1477
        %v1482 = vpack.c.b16 %v1480, %v1480
        %v1483 = vpack.c.b16 %v1481, %v1481
        %1484 = vrot.lane.b32.xlu0 %v1482, 32
        %v1485 = vpop.permute.xlu0 %1484
        %1486 = vrot.lane.b32.xlu0 %v1483, 32
        %v1487 = vpop.permute.xlu0 %1486
        %vm1490 = vcmask 388352
        %1491 = vst.msk [vmem:[#allocation4] sm:$0xf] %vm1490, %v1485
        %1492 = vst.msk [vmem:[#allocation4 + $0x4] sm:$0xf] %vm1490, %v1487
        %1493 = vrot.lane.b32.xlu0 %v771, 80
        %v1494 = vpop.permute.xlu0 %1493
        %1495 = vrot.lane.b32.xlu0 %v773, 80
        %v1496 = vpop.permute.xlu0 %1495
        %v1498 = vsel %vm809, %v1494, 0
        %v1501 = vsel %vm809, %v1496, 0
        %1503 = vmatprep.subr.bf16.mxu0 0
        %1504 = vmatpush1.bf16.xpose.msra.mxu0 %v1501
        %1505 = vmatprep.subr.bf16.mxu0 0
        %1506 = vmatpush1.bf16.xpose.msra.mxu0 0
        %1507 = vmatprep.subr.bf16.mxu0 0
        %1508 = vmatpush1.bf16.xpose.msra.mxu0 0
        %1509 = vmatprep.subr.bf16.mxu0 0
        %1510 = vmatpush1.bf16.xpose.msra.mxu0 0
        %1511 = vmatprep.subr.bf16.mxu0 0
        %1512 = vmatpush1.bf16.xpose.msra.mxu0 0
        %1513 = vmatprep.subr.bf16.mxu0 0
        %1514 = vmatpush1.bf16.xpose.msra.mxu0 0
        %1515 = vmatprep.subr.bf16.mxu0 0
        %1516 = vmatpush1.bf16.xpose.msra.mxu0 0
        %1517 = vmatprep.subr.bf16.mxu0 0
        %1518 = vmatpush1.bf16.xpose.msra.mxu0 0
        %1519 = vmatprep.subr.bf16.mxu0 0
        %1520 = vmatpush1.bf16.xpose.msra.mxu0 0
        %1521 = vmatprep.subr.bf16.mxu0 0
        %1522 = vmatpush1.bf16.xpose.msra.mxu0 0
        %1523 = vmatprep.subr.bf16.mxu0 0
        %1524 = vmatpush1.bf16.xpose.msra.mxu0 0
        %1525 = vmatprep.subr.bf16.mxu0 0
        %1526 = vmatpush1.bf16.xpose.msra.mxu0 0
        %1527 = vmatprep.subr.bf16.mxu0 0
        %1528 = vmatpush1.bf16.xpose.msra.mxu0 0
        %1529 = vmatprep.subr.bf16.mxu0 0
        %1530 = vmatpush1.bf16.xpose.msra.mxu0 0
        %1531 = vmatprep.subr.bf16.mxu0 0
        %1532 = vmatpush1.bf16.xpose.msra.mxu0 0
        %1533 = vmatprep.subr.bf16.mxu0 0
        %1534 = vmatpush1.bf16.xpose.msra.mxu0 0
        %1535 = vmatprep.mubr.bf16.mxu0 0
        %1536 = vmatmul.mubr.bf16.gmra.mrb[0].mxu0 %v1498
        %v1537 = vpop.f32.mrb[0].mxu0
        %v1538 = vadd.f32 %v802, %v1537
        %v1539 = vpop.f32.mrb[0].mxu0
        %v1540 = vpop.f32.mrb[0].mxu0
        %v1541 = vpop.f32.mrb[0].mxu0
        %1542 = vdwg.mxu0
        %1543 = vrot.lane.b32.xlu0 %v772, 80
        %v1544 = vpop.permute.xlu0 %1543
        %1545 = vrot.lane.b32.xlu0 %v774, 80
        %v1546 = vpop.permute.xlu0 %1545
        %v1548 = vsel %vm809, %v1544, 0
        %v1551 = vsel %vm809, %v1546, 0
        %1553 = vmatprep.subr.bf16.mxu0 0
        %1554 = vmatpush1.bf16.xpose.msra.mxu0 %v1551
        %1555 = vmatprep.subr.bf16.mxu0 0
        %1556 = vmatpush1.bf16.xpose.msra.mxu0 0
        %1557 = vmatprep.subr.bf16.mxu0 0
        %1558 = vmatpush1.bf16.xpose.msra.mxu0 0
        %1559 = vmatprep.subr.bf16.mxu0 0
        %1560 = vmatpush1.bf16.xpose.msra.mxu0 0
        %1561 = vmatprep.subr.bf16.mxu0 0
        %1562 = vmatpush1.bf16.xpose.msra.mxu0 0
        %1563 = vmatprep.subr.bf16.mxu0 0
        %1564 = vmatpush1.bf16.xpose.msra.mxu0 0
        %1565 = vmatprep.subr.bf16.mxu0 0
        %1566 = vmatpush1.bf16.xpose.msra.mxu0 0
        %1567 = vmatprep.subr.bf16.mxu0 0
        %1568 = vmatpush1.bf16.xpose.msra.mxu0 0
        %1569 = vmatprep.subr.bf16.mxu0 0
        %1570 = vmatpush1.bf16.xpose.msra.mxu0 0
        %1571 = vmatprep.subr.bf16.mxu0 0
        %1572 = vmatpush1.bf16.xpose.msra.mxu0 0
        %1573 = vmatprep.subr.bf16.mxu0 0
        %1574 = vmatpush1.bf16.xpose.msra.mxu0 0
        %1575 = vmatprep.subr.bf16.mxu0 0
        %1576 = vmatpush1.bf16.xpose.msra.mxu0 0
        %1577 = vmatprep.subr.bf16.mxu0 0
        %1578 = vmatpush1.bf16.xpose.msra.mxu0 0
        %1579 = vmatprep.subr.bf16.mxu0 0
        %1580 = vmatpush1.bf16.xpose.msra.mxu0 0
        %1581 = vmatprep.subr.bf16.mxu0 0
        %1582 = vmatpush1.bf16.xpose.msra.mxu0 0
        %1583 = vmatprep.subr.bf16.mxu0 0
        %1584 = vmatpush1.bf16.xpose.msra.mxu0 0
        %1585 = vmatprep.mubr.bf16.mxu0 0
        %1586 = vmatmul.mubr.bf16.gmra.mrb[0].mxu0 %v1548
        %v1587 = vpop.f32.mrb[0].mxu0
        %v1588 = vadd.f32 %v806, %v1587
        %v1589 = vpop.f32.mrb[0].mxu0
        %v1590 = vpop.f32.mrb[0].mxu0
        %v1591 = vpop.f32.mrb[0].mxu0
        %1592 = vdwg.mxu0
        %v1593 = vsel %vm809, %v1538, -inf
        %1594 = vmax.xlane.f32.xlu0 %v1593
        %v1595 = vpop.xlane.xlu0 %1594
        %v1596 = vsel %vm809, %v1588, -inf
        %1597 = vmax.xlane.f32.xlu0 %v1596
        %v1598 = vpop.xlane.xlu0 %1597
        %v1599 = vsub.f32 %v1538, %v1595
        %v1600 = vsub.f32 %v1588, %v1598
        %v1601 = vmul.f32 %v1599, 1.442695
        %v1602 = vpow.pop %v1601
        %v1603 = vmul.f32 %v1600, 1.442695
        %v1604 = vpow.pop %v1603
        %v1605 = vsel %vm809, %v1602, 0.0
        %1606 = vadd.xlane.f32.xlu0 %v1605
        %v1607 = vpop.xlane.xlu0 %1606
        %v1608 = vsel %vm809, %v1604, 0.0
        %1609 = vadd.xlane.f32.xlu0 %v1608
        %v1610 = vpop.xlane.xlu0 %1609
        %v1611 = vrcp.pop %v1607
        %v1612 = vrcp.pop %v1610
        %v1613 = vmul.f32 %v1602, %v1611
        %v1614 = vmul.f32 %v1604, %v1612
        %v1615 = vpack.c.bf16 %v1613, %v1613
        %v1616 = vpack.c.bf16 %v1614, %v1614
        %1617 = vrot.lane.b32.xlu0 %v773, 16
        %v1618 = vpop.permute.xlu0 %1617
        %v1621 = vsel %vm809, %v1615, 0
        %1623 = vmatprep.subr.bf16.mxu0 0
        %1624 = vmatpush1.bf16.msra.mxu0 %v1618
        %1625 = vmatprep.subr.bf16.mxu0 0
        %1626 = vmatpush1.bf16.msra.mxu0 0
        %1627 = vmatprep.subr.bf16.mxu0 0
        %1628 = vmatpush1.bf16.msra.mxu0 0
        %1629 = vmatprep.subr.bf16.mxu0 0
        %1630 = vmatpush1.bf16.msra.mxu0 0
        %1631 = vmatprep.subr.bf16.mxu0 0
        %1632 = vmatpush1.bf16.msra.mxu0 0
        %1633 = vmatprep.subr.bf16.mxu0 0
        %1634 = vmatpush1.bf16.msra.mxu0 0
        %1635 = vmatprep.subr.bf16.mxu0 0
        %1636 = vmatpush1.bf16.msra.mxu0 0
        %1637 = vmatprep.subr.bf16.mxu0 0
        %1638 = vmatpush1.bf16.msra.mxu0 0
        %1639 = vmatprep.subr.bf16.mxu0 0
        %1640 = vmatpush1.bf16.msra.mxu0 0
        %1641 = vmatprep.subr.bf16.mxu0 0
        %1642 = vmatpush1.bf16.msra.mxu0 0
        %1643 = vmatprep.subr.bf16.mxu0 0
        %1644 = vmatpush1.bf16.msra.mxu0 0
        %1645 = vmatprep.subr.bf16.mxu0 0
        %1646 = vmatpush1.bf16.msra.mxu0 0
        %1647 = vmatprep.subr.bf16.mxu0 0
        %1648 = vmatpush1.bf16.msra.mxu0 0
        %1649 = vmatprep.subr.bf16.mxu0 0
        %1650 = vmatpush1.bf16.msra.mxu0 0
        %1651 = vmatprep.subr.bf16.mxu0 0
        %1652 = vmatpush1.bf16.msra.mxu0 0
        %1653 = vmatprep.subr.bf16.mxu0 0
        %1654 = vmatpush1.bf16.msra.mxu0 0
        %1655 = vmatprep.mubr.bf16.mxu0 0
        %1656 = vmatmul.mubr.bf16.gmra.mrb[0].mxu0 %v1621
        %v1657 = vpop.f32.mrb[0].mxu0
        %v1658 = vadd.f32 0.0, %v1657
        %v1659 = vpop.f32.mrb[0].mxu0
        %v1660 = vpop.f32.mrb[0].mxu0
        %v1661 = vpop.f32.mrb[0].mxu0
        %1662 = vdwg.mxu0
        %1663 = vrot.lane.b32.xlu0 %v774, 16
        %v1664 = vpop.permute.xlu0 %1663
        %v1667 = vsel %vm809, %v1616, 0
        %1669 = vmatprep.subr.bf16.mxu0 0
        %1670 = vmatpush1.bf16.msra.mxu0 %v1664
        %1671 = vmatprep.subr.bf16.mxu0 0
        %1672 = vmatpush1.bf16.msra.mxu0 0
        %1673 = vmatprep.subr.bf16.mxu0 0
        %1674 = vmatpush1.bf16.msra.mxu0 0
        %1675 = vmatprep.subr.bf16.mxu0 0
        %1676 = vmatpush1.bf16.msra.mxu0 0
        %1677 = vmatprep.subr.bf16.mxu0 0
        %1678 = vmatpush1.bf16.msra.mxu0 0
        %1679 = vmatprep.subr.bf16.mxu0 0
        %1680 = vmatpush1.bf16.msra.mxu0 0
        %1681 = vmatprep.subr.bf16.mxu0 0
        %1682 = vmatpush1.bf16.msra.mxu0 0
        %1683 = vmatprep.subr.bf16.mxu0 0
        %1684 = vmatpush1.bf16.msra.mxu0 0
        %1685 = vmatprep.subr.bf16.mxu0 0
        %1686 = vmatpush1.bf16.msra.mxu0 0
        %1687 = vmatprep.subr.bf16.mxu0 0
        %1688 = vmatpush1.bf16.msra.mxu0 0
        %1689 = vmatprep.subr.bf16.mxu0 0
        %1690 = vmatpush1.bf16.msra.mxu0 0
        %1691 = vmatprep.subr.bf16.mxu0 0
        %1692 = vmatpush1.bf16.msra.mxu0 0
        %1693 = vmatprep.subr.bf16.mxu0 0
        %1694 = vmatpush1.bf16.msra.mxu0 0
        %1695 = vmatprep.subr.bf16.mxu0 0
        %1696 = vmatpush1.bf16.msra.mxu0 0
        %1697 = vmatprep.subr.bf16.mxu0 0
        %1698 = vmatpush1.bf16.msra.mxu0 0
        %1699 = vmatprep.subr.bf16.mxu0 0
        %1700 = vmatpush1.bf16.msra.mxu0 0
        %1701 = vmatprep.mubr.bf16.mxu0 0
        %1702 = vmatmul.mubr.bf16.gmra.mrb[0].mxu0 %v1667
        %v1703 = vpop.f32.mrb[0].mxu0
        %v1704 = vadd.f32 0.0, %v1703
        %v1705 = vpop.f32.mrb[0].mxu0
        %v1706 = vpop.f32.mrb[0].mxu0
        %v1707 = vpop.f32.mrb[0].mxu0
        %1708 = vdwg.mxu0
        %v1709 = vpack.c.bf16 %v1658, %v1658
        %v1710 = vpack.c.bf16 %v1704, %v1704
        %v1713 = vunpack.c.l.b16 %v1709
        %v1714 = vunpack.c.l.b16 %v1710
        %v1715 = vpack.c.b16 %v1713, %v1713
        %v1716 = vpack.c.b16 %v1714, %v1714
        %1717 = vrot.lane.b32.xlu0 %v1715, 48
        %v1718 = vpop.permute.xlu0 %1717
        %1719 = vrot.lane.b32.xlu0 %v1716, 48
        %v1720 = vpop.permute.xlu0 %1719
        %vm1723 = vcmask 519552
        %1724 = vst.msk [vmem:[#allocation4] sm:$0xf] %vm1723, %v1718
        %1725 = vst.msk [vmem:[#allocation4 + $0x4] sm:$0xf] %vm1723, %v1720
        %v1726 = vld [vmem:[#allocation4] sm:$0xf]
        %v1727 = vld [vmem:[#allocation4 + $0x4] sm:$0xf]
        %v1728 = vld [vmem:[%s511] sm:$0xf]
        %v1729 = vld [vmem:[%s511 + $0x4] sm:$0xf]
        %v1730 = vld [vmem:[%s511 + $0x8] sm:$0xf]
        %v1731 = vld [vmem:[%s511 + $0xc] sm:$0xf]
        %v1732 = vld [vmem:[%s511 + $0x10] sm:$0xf]
        %v1733 = vld [vmem:[%s511 + $0x14] sm:$0xf]
        %v1734 = vld [vmem:[%s511 + $0x18] sm:$0xf]
        %v1735 = vld [vmem:[%s511 + $0x1c] sm:$0xf]
        %v1738 = vunpack.c.l.b16 %v1726
        %v1739 = vunpack.c.l.b16 %v1727
        %v1740 = vpack.c.b16 %v1739, %v1738
        %v1749 = vunpack.c.l.b16 %v1728
        %v1750 = vunpack.c.l.b16 %v1729
        %v1751 = vunpack.c.l.b16 %v1730
        %v1752 = vunpack.c.l.b16 %v1731
        %v1753 = vunpack.c.l.b16 %v1732
        %v1754 = vunpack.c.l.b16 %v1733
        %v1755 = vunpack.c.l.b16 %v1734
        %v1756 = vunpack.c.l.b16 %v1735
        %v1757 = vpack.c.b16 %v1750, %v1749
        %v1758 = vpack.c.b16 %v1752, %v1751
        %v1759 = vpack.c.b16 %v1754, %v1753
        %v1760 = vpack.c.b16 %v1756, %v1755
        %vm1765 = vcmask 523264
        %v1767 = vsel %vm1765, %v1740, 0
        %1769 = vmatprep.subr.bf16.mxu0 0
        %1770 = vmatpush1.bf16.msra.mxu0 %v1757
        %1771 = vmatprep.subr.bf16.mxu0 0
        %1772 = vmatpush1.bf16.msra.mxu0 %v1758
        %1773 = vmatprep.subr.bf16.mxu0 0
        %1774 = vmatpush1.bf16.msra.mxu0 %v1759
        %1775 = vmatprep.subr.bf16.mxu0 0
        %1776 = vmatpush1.bf16.msra.mxu0 %v1760
        %1777 = vmatprep.subr.bf16.mxu0 0
        %1778 = vmatpush1.bf16.msra.mxu0 0
        %1779 = vmatprep.subr.bf16.mxu0 0
        %1780 = vmatpush1.bf16.msra.mxu0 0
        %1781 = vmatprep.subr.bf16.mxu0 0
        %1782 = vmatpush1.bf16.msra.mxu0 0
        %1783 = vmatprep.subr.bf16.mxu0 0
        %1784 = vmatpush1.bf16.msra.mxu0 0
        %1785 = vmatprep.subr.bf16.mxu0 0
        %1786 = vmatpush1.bf16.msra.mxu0 0
        %1787 = vmatprep.subr.bf16.mxu0 0
        %1788 = vmatpush1.bf16.msra.mxu0 0
        %1789 = vmatprep.subr.bf16.mxu0 0
        %1790 = vmatpush1.bf16.msra.mxu0 0
        %1791 = vmatprep.subr.bf16.mxu0 0
        %1792 = vmatpush1.bf16.msra.mxu0 0
        %1793 = vmatprep.subr.bf16.mxu0 0
        %1794 = vmatpush1.bf16.msra.mxu0 0
        %1795 = vmatprep.subr.bf16.mxu0 0
        %1796 = vmatpush1.bf16.msra.mxu0 0
        %1797 = vmatprep.subr.bf16.mxu0 0
        %1798 = vmatpush1.bf16.msra.mxu0 0
        %1799 = vmatprep.subr.bf16.mxu0 0
        %1800 = vmatpush1.bf16.msra.mxu0 0
        %1801 = vmatprep.mubr.bf16.mxu0 0
        %1802 = vmatmul.mubr.bf16.gmra.mrb[0].mxu0 %v1767
        %v1803 = vpop.f32.mrb[0].mxu0
        %v1804 = vadd.f32 0.0, %v1803
        %v1805 = vpop.f32.mrb[0].mxu0
        %v1806 = vpop.f32.mrb[0].mxu0
        %v1807 = vadd.f32 0.0, %v1806
        %v1808 = vpop.f32.mrb[0].mxu0
        %1809 = vdwg.mxu0
        %v1810 = vadd.f32 %v537, %v1804
        %v1811 = vadd.f32 %v538, %v1807
        %v1812 = vsel %vm543, %v1810, 0.0
        %1813 = vadd.xlane.f32.xlu0 %v1812
        %v1814 = vpop.xlane.xlu0 %1813
        %v1815 = vsel %vm543, %v1811, 0.0
        %1816 = vadd.xlane.f32.xlu0 %v1815
        %v1817 = vpop.xlane.xlu0 %1816
        %v1818 = vmul.f32 %v1814, %v550
        %v1819 = vmul.f32 %v1817, %v550
        %v1820 = vsub.f32 %v1810, %v1818
        %v1821 = vsub.f32 %v1811, %v1819
        %v1822 = vmul.f32 %v1820, %v1820
        %v1823 = vmul.f32 %v1821, %v1821
        %v1824 = vsel %vm543, %v1822, 0.0
        %1825 = vadd.xlane.f32.xlu0 %v1824
        %v1826 = vpop.xlane.xlu0 %1825
        %v1827 = vsel %vm543, %v1823, 0.0
        %1828 = vadd.xlane.f32.xlu0 %v1827
        %v1829 = vpop.xlane.xlu0 %1828
        %v1830 = vmul.f32 %v1826, %v550
        %v1831 = vmul.f32 %v1829, %v550
        %v1832 = vadd.f32 %v1830, 1e-05
        %v1833 = vadd.f32 %v1831, 1e-05
        %v1834 = vrsqrt.pop %v1832
        %v1835 = vrsqrt.pop %v1833
        %v1836 = vmul.f32 %v1820, %v1834
        %v1837 = vmul.f32 %v1821, %v1835
        %v1838 = vlaneseq
        %v1839 = vshrl.u32 %v1838, 7
        %v1840 = vsub.s32 4, %v1839
        %v1841 = vrot.slane %v536, %v1840
        %v1842 = vmul.f32 %v1836, %v1841
        %v1843 = vmul.f32 %v1837, %v1841
        %v1844 = vlaneseq
        %v1845 = vshrl.u32 %v1844, 7
        %v1846 = vsub.s32 5, %v1845
        %v1847 = vrot.slane %v536, %v1846
        %v1848 = vadd.f32 %v1842, %v1847
        %v1849 = vadd.f32 %v1843, %v1847
        %v1850 = vpack.c.bf16 %v1849, %v1848
        %v1851 = vld [vmem:[%s520] sm:$0xf]
        %v1852 = vld [vmem:[%s520 + $0x4] sm:$0xf]
        %v1853 = vld [vmem:[%s520 + $0x8] sm:$0xf]
        %v1854 = vld [vmem:[%s520 + $0xc] sm:$0xf]
        %v1859 = vunpack.c.l.b16 %v1851
        %v1860 = vunpack.c.l.b16 %v1852
        %v1861 = vunpack.c.l.b16 %v1853
        %v1862 = vunpack.c.l.b16 %v1854
        %v1863 = vpack.c.b16 %v1860, %v1859
        %v1864 = vpack.c.b16 %v1862, %v1861
        %v1868 = vsel %vm543, %v1850, 0
        %1870 = vmatprep.subr.bf16.mxu0 0
        %1871 = vmatpush1.bf16.msra.mxu0 %v1863
        %1872 = vmatprep.subr.bf16.mxu0 0
        %1873 = vmatpush1.bf16.msra.mxu0 %v1864
        %1874 = vmatprep.subr.bf16.mxu0 0
        %1875 = vmatpush1.bf16.msra.mxu0 0
        %1876 = vmatprep.subr.bf16.mxu0 0
        %1877 = vmatpush1.bf16.msra.mxu0 0
        %1878 = vmatprep.subr.bf16.mxu0 0
        %1879 = vmatpush1.bf16.msra.mxu0 0
        %1880 = vmatprep.subr.bf16.mxu0 0
        %1881 = vmatpush1.bf16.msra.mxu0 0
        %1882 = vmatprep.subr.bf16.mxu0 0
        %1883 = vmatpush1.bf16.msra.mxu0 0
        %1884 = vmatprep.subr.bf16.mxu0 0
        %1885 = vmatpush1.bf16.msra.mxu0 0
        %1886 = vmatprep.subr.bf16.mxu0 0
        %1887 = vmatpush1.bf16.msra.mxu0 0
        %1888 = vmatprep.subr.bf16.mxu0 0
        %1889 = vmatpush1.bf16.msra.mxu0 0
        %1890 = vmatprep.subr.bf16.mxu0 0
        %1891 = vmatpush1.bf16.msra.mxu0 0
        %1892 = vmatprep.subr.bf16.mxu0 0
        %1893 = vmatpush1.bf16.msra.mxu0 0
        %1894 = vmatprep.subr.bf16.mxu0 0
        %1895 = vmatpush1.bf16.msra.mxu0 0
        %1896 = vmatprep.subr.bf16.mxu0 0
        %1897 = vmatpush1.bf16.msra.mxu0 0
        %1898 = vmatprep.subr.bf16.mxu0 0
        %1899 = vmatpush1.bf16.msra.mxu0 0
        %1900 = vmatprep.subr.bf16.mxu0 0
        %1901 = vmatpush1.bf16.msra.mxu0 0
        %1902 = vmatprep.mubr.bf16.mxu0 0
        %1903 = vmatmul.mubr.bf16.gmra.mrb[0].mxu0 %v1868
        %v1904 = vpop.f32.mrb[0].mxu0
        %v1905 = vadd.f32 0.0, %v1904
        %v1906 = vpop.f32.mrb[0].mxu0
        %v1907 = vpop.f32.mrb[0].mxu0
        %v1908 = vadd.f32 0.0, %v1907
        %v1909 = vpop.f32.mrb[0].mxu0
        %1910 = vdwg.mxu0
        %v1911 = vmul.f32 %v1905, 0.5
        %v1912 = vmul.f32 %v1908, 0.5
        %v1913 = vmul.f32 %v1905, 0.70710677
        %v1914 = vmul.f32 %v1908, 0.70710677
        %v1915 = verf.f32.pop %v1913
        %v1916 = verf.f32.pop %v1914
        %v1917 = vadd.f32 %v1915, 1.0
        %v1918 = vadd.f32 %v1916, 1.0
        %v1919 = vmul.f32 %v1911, %v1917
        %v1920 = vmul.f32 %v1912, %v1918
        %v1921 = vpack.c.bf16 %v1920, %v1919
        %v1922 = vld [vmem:[%s525] sm:$0xf]
        %v1923 = vld [vmem:[%s525 + $0x4] sm:$0xf]
        %v1924 = vld [vmem:[%s525 + $0x8] sm:$0xf]
        %v1925 = vld [vmem:[%s525 + $0xc] sm:$0xf]
        %v1926 = vld [vmem:[%s525 + $0x10] sm:$0xf]
        %v1927 = vld [vmem:[%s525 + $0x14] sm:$0xf]
        %v1928 = vld [vmem:[%s525 + $0x18] sm:$0xf]
        %v1929 = vld [vmem:[%s525 + $0x1c] sm:$0xf]
        %v1930 = vld [vmem:[%s525 + $0x20] sm:$0xf]
        %v1931 = vld [vmem:[%s525 + $0x24] sm:$0xf]
        %v1932 = vld [vmem:[%s525 + $0x28] sm:$0xf]
        %v1933 = vld [vmem:[%s525 + $0x2c] sm:$0xf]
        %v1934 = vld [vmem:[%s525 + $0x30] sm:$0xf]
        %v1935 = vld [vmem:[%s525 + $0x34] sm:$0xf]
        %v1936 = vld [vmem:[%s525 + $0x38] sm:$0xf]
        %v1937 = vld [vmem:[%s525 + $0x3c] sm:$0xf]
        %v1954 = vunpack.c.l.b16 %v1922
        %v1955 = vunpack.c.l.b16 %v1923
        %v1956 = vunpack.c.l.b16 %v1924
        %v1957 = vunpack.c.l.b16 %v1925
        %v1958 = vunpack.c.l.b16 %v1926
        %v1959 = vunpack.c.l.b16 %v1927
        %v1960 = vunpack.c.l.b16 %v1928
        %v1961 = vunpack.c.l.b16 %v1929
        %v1962 = vunpack.c.l.b16 %v1930
        %v1963 = vunpack.c.l.b16 %v1931
        %v1964 = vunpack.c.l.b16 %v1932
        %v1965 = vunpack.c.l.b16 %v1933
        %v1966 = vunpack.c.l.b16 %v1934
        %v1967 = vunpack.c.l.b16 %v1935
        %v1968 = vunpack.c.l.b16 %v1936
        %v1969 = vunpack.c.l.b16 %v1937
        %v1970 = vpack.c.b16 %v1955, %v1954
        %v1971 = vpack.c.b16 %v1957, %v1956
        %v1972 = vpack.c.b16 %v1959, %v1958
        %v1973 = vpack.c.b16 %v1961, %v1960
        %v1974 = vpack.c.b16 %v1963, %v1962
        %v1975 = vpack.c.b16 %v1965, %v1964
        %v1976 = vpack.c.b16 %v1967, %v1966
        %v1977 = vpack.c.b16 %v1969, %v1968
        %1986 = vmatprep.subr.bf16.mxu0 0
        %1987 = vmatpush1.bf16.msra.mxu0 %v1970
        %1988 = vmatprep.subr.bf16.mxu0 0
        %1989 = vmatpush1.bf16.msra.mxu0 %v1971
        %1990 = vmatprep.subr.bf16.mxu0 0
        %1991 = vmatpush1.bf16.msra.mxu0 %v1972
        %1992 = vmatprep.subr.bf16.mxu0 0
        %1993 = vmatpush1.bf16.msra.mxu0 %v1973
        %1994 = vmatprep.subr.bf16.mxu0 0
        %1995 = vmatpush1.bf16.msra.mxu0 %v1974
        %1996 = vmatprep.subr.bf16.mxu0 0
        %1997 = vmatpush1.bf16.msra.mxu0 %v1975
        %1998 = vmatprep.subr.bf16.mxu0 0
        %1999 = vmatpush1.bf16.msra.mxu0 %v1976
        %2000 = vmatprep.subr.bf16.mxu0 0
        %2001 = vmatpush1.bf16.msra.mxu0 %v1977
        %2002 = vmatprep.subr.bf16.mxu0 0
        %2003 = vmatpush1.bf16.msra.mxu0 0
        %2004 = vmatprep.subr.bf16.mxu0 0
        %2005 = vmatpush1.bf16.msra.mxu0 0
        %2006 = vmatprep.subr.bf16.mxu0 0
        %2007 = vmatpush1.bf16.msra.mxu0 0
        %2008 = vmatprep.subr.bf16.mxu0 0
        %2009 = vmatpush1.bf16.msra.mxu0 0
        %2010 = vmatprep.subr.bf16.mxu0 0
        %2011 = vmatpush1.bf16.msra.mxu0 0
        %2012 = vmatprep.subr.bf16.mxu0 0
        %2013 = vmatpush1.bf16.msra.mxu0 0
        %2014 = vmatprep.subr.bf16.mxu0 0
        %2015 = vmatpush1.bf16.msra.mxu0 0
        %2016 = vmatprep.subr.bf16.mxu0 0
        %2017 = vmatpush1.bf16.msra.mxu0 0
        %2018 = vmatprep.mubr.bf16.mxu0 0
        %2019 = vmatmul.mubr.bf16.gmra.mrb[0].mxu0 %v1921
        %v2020 = vpop.f32.mrb[0].mxu0
        %v2021 = vadd.f32 0.0, %v2020
        %v2022 = vpop.f32.mrb[0].mxu0
        %v2023 = vpop.f32.mrb[0].mxu0
        %v2024 = vadd.f32 0.0, %v2023
        %v2025 = vpop.f32.mrb[0].mxu0
        %2026 = vdwg.mxu0
        %v2027 = vadd.f32 %v1810, %v2021
        %v2028 = vadd.f32 %v1811, %v2024
        %2029 = vst.msk [vmem:[#allocation2] sm:$0xff] %vm543, %v2027
        %2030 = vst.msk [vmem:[#allocation2 + $0x8] sm:$0xff] %vm543, %v2028
        %p2031 = scmp.eq.s32.totalorder %s28, 1
        // Predicated region
        $region69: #{resampler_forward.1} parent=63 // pred_check
          %p2032 = pneg %p2031
        $region70: #{resampler_forward.1} parent=63 // pred_check_branch
          %2034 = sbr.rel (%p2032) target = $region72
        $region71: #{resampler_forward.1} parent=63 // pred_region
          %v2035 = vpack.c.bf16 %v2028, %v2027
          %v2036 = vld [vmem:[%s9] sm:$0xf]
          %v2037 = vld [vmem:[%s9 + $0x4] sm:$0xf]
          %v2038 = vld [vmem:[%s9 + $0x8] sm:$0xf]
          %v2039 = vld [vmem:[%s9 + $0xc] sm:$0xf]
          %v2040 = vld [vmem:[%s10] sm:$0x1]
          %v2041 = vlaneseq
          %v2042 = vshrl.u32 %v2041, 7
          %v2043 = vsub.s32 0, %v2042
          %v2044 = vrot.slane %v2040, %v2043
          %v2049 = vunpack.c.l.b16 %v2036
          %v2050 = vunpack.c.l.b16 %v2037
          %v2051 = vunpack.c.l.b16 %v2038
          %v2052 = vunpack.c.l.b16 %v2039
          %v2053 = vpack.c.b16 %v2050, %v2049
          %v2054 = vpack.c.b16 %v2052, %v2051
          %v2058 = vsel %vm543, %v2035, 0
          %2060 = vmatprep.subr.bf16.mxu0 0
          %2061 = vmatpush1.bf16.msra.mxu0 %v2053
          %2062 = vmatprep.subr.bf16.mxu0 0
          %2063 = vmatpush1.bf16.msra.mxu0 %v2054
          %2064 = vmatprep.subr.bf16.mxu0 0
          %2065 = vmatpush1.bf16.msra.mxu0 0
          %2066 = vmatprep.subr.bf16.mxu0 0
          %2067 = vmatpush1.bf16.msra.mxu0 0
          %2068 = vmatprep.subr.bf16.mxu0 0
          %2069 = vmatpush1.bf16.msra.mxu0 0
          %2070 = vmatprep.subr.bf16.mxu0 0
          %2071 = vmatpush1.bf16.msra.mxu0 0
          %2072 = vmatprep.subr.bf16.mxu0 0
          %2073 = vmatpush1.bf16.msra.mxu0 0
          %2074 = vmatprep.subr.bf16.mxu0 0
          %2075 = vmatpush1.bf16.msra.mxu0 0
          %2076 = vmatprep.subr.bf16.mxu0 0
          %2077 = vmatpush1.bf16.msra.mxu0 0
          %2078 = vmatprep.subr.bf16.mxu0 0
          %2079 = vmatpush1.bf16.msra.mxu0 0
          %2080 = vmatprep.subr.bf16.mxu0 0
          %2081 = vmatpush1.bf16.msra.mxu0 0
          %2082 = vmatprep.subr.bf16.mxu0 0
          %2083 = vmatpush1.bf16.msra.mxu0 0
          %2084 = vmatprep.subr.bf16.mxu0 0
          %2085 = vmatpush1.bf16.msra.mxu0 0
          %2086 = vmatprep.subr.bf16.mxu0 0
          %2087 = vmatpush1.bf16.msra.mxu0 0
          %2088 = vmatprep.subr.bf16.mxu0 0
          %2089 = vmatpush1.bf16.msra.mxu0 0
          %2090 = vmatprep.subr.bf16.mxu0 0
          %2091 = vmatpush1.bf16.msra.mxu0 0
          %2092 = vmatprep.mubr.bf16.mxu0 0
          %2093 = vmatmul.mubr.bf16.gmra.mrb[0].mxu0 %v2058
          %v2094 = vpop.f32.mrb[0].mxu0
          %v2095 = vadd.f32 %v2044, %v2094
          %v2096 = vpop.f32.mrb[0].mxu0
          %v2097 = vpop.f32.mrb[0].mxu0
          %v2098 = vadd.f32 %v2044, %v2097
          %v2099 = vpop.f32.mrb[0].mxu0
          %2100 = vdwg.mxu0
          %v2101 = vld [vmem:[%s10 + $0x1] sm:$0x1]
          %v2102 = vld [vmem:[%s10 + $0x2] sm:$0x1]
          %v2103 = vsel %vm543, %v2095, 0.0
          %2104 = vadd.xlane.f32.xlu0 %v2103
          %v2105 = vpop.xlane.xlu0 %2104
          %v2106 = vsel %vm543, %v2098, 0.0
          %2107 = vadd.xlane.f32.xlu0 %v2106
          %v2108 = vpop.xlane.xlu0 %2107
          %v2109 = vmul.f32 %v2105, %v550
          %v2110 = vmul.f32 %v2108, %v550
          %v2111 = vsub.f32 %v2095, %v2109
          %v2112 = vsub.f32 %v2098, %v2110
          %v2113 = vmul.f32 %v2111, %v2111
          %v2114 = vmul.f32 %v2112, %v2112
          %v2115 = vsel %vm543, %v2113, 0.0
          %2116 = vadd.xlane.f32.xlu0 %v2115
          %v2117 = vpop.xlane.xlu0 %2116
          %v2118 = vsel %vm543, %v2114, 0.0
          %2119 = vadd.xlane.f32.xlu0 %v2118
          %v2120 = vpop.xlane.xlu0 %2119
          %v2121 = vmul.f32 %v2117, %v550
          %v2122 = vmul.f32 %v2120, %v550
          %v2123 = vadd.f32 %v2121, 1e-05
          %v2124 = vadd.f32 %v2122, 1e-05
          %v2125 = vrsqrt.pop %v2123
          %v2126 = vrsqrt.pop %v2124
          %v2127 = vmul.f32 %v2111, %v2125
          %v2128 = vmul.f32 %v2112, %v2126
          %v2129 = vlaneseq
          %v2130 = vshrl.u32 %v2129, 7
          %v2131 = vsub.s32 0, %v2130
          %v2132 = vrot.slane %v2101, %v2131
          %v2133 = vmul.f32 %v2127, %v2132
          %v2134 = vmul.f32 %v2128, %v2132
          %v2135 = vlaneseq
          %v2136 = vshrl.u32 %v2135, 7
          %v2137 = vsub.s32 0, %v2136
          %v2138 = vrot.slane %v2102, %v2137
          %v2139 = vadd.f32 %v2133, %v2138
          %v2140 = vadd.f32 %v2134, %v2138
          %2141 = vst.msk [vmem:[#allocation5] sm:$0xff] %vm543, %v2139
          %2142 = vst.msk [vmem:[#allocation5 + $0x8] sm:$0xff] %vm543, %v2140
        $region72: #{resampler_forward.1} parent=63 // pred_fallthru
          _
        // Predicated region
        $region73: #{resampler_forward.1} parent=63 // pred_check
          %p2143 = pneg %p324
        $region74: #{resampler_forward.1} parent=63 // pred_check_branch
          %2145 = sbr.rel (%p2143) target = $region76
        $region75: #{resampler_forward.1} parent=63 // pred_region
          %s2146 = smul.u32 2, %s27
          %s2148 = ssub.s32 256, 256
          %2149 = vsyncadd [#allocation6], %s2148
          %s2150 = smul.addr %s2146, 128
          %s2151 = scalar_lea.hbm %s11, %s2150
          %s2152 = sshll.u32 [#allocation5], 4
          %s2153 = int_to_ptr.vmem [resolvable:$true] %s2152
          %2158 = dma.vmem_to_hbm [thread:$0]  %s2153, 256, %s2151, [#allocation6], 128, 128, 8
        $region76: #{resampler_forward.1} parent=63 // pred_fallthru
          _
        // Predicated region
        $region77: #{resampler_forward.1} parent=63 // pred_check
          %p2159 = pneg %p324
        $region78: #{resampler_forward.1} parent=63 // pred_check_branch
          %2161 = sbr.rel (%p2159) target = $region80
        $region79: #{resampler_forward.1} parent=63 // pred_region
          %2162 = dma.done [#allocation6], 256
        $region80: #{resampler_forward.1} parent=63 // pred_fallthru
          _
      $region64: #{resampler_forward.1} parent=5 // pred_fallthru
        _
      %p2163 = scmp.le.s32.totalorder 2, %s18
      // Predicated region
      $region81: #{resampler_forward.1} parent=5 // pred_check
        %p2164 = pneg %p2163
      $region82: #{resampler_forward.1} parent=5 // pred_check_branch
        %2166 = sbr.rel (%p2164) target = $region84
      $region83: #{resampler_forward.1} parent=5 // pred_region
        %s2167 = ssub.s32 %s18, 2
      $region84: #{resampler_forward.1} parent=5 // pred_fallthru
        _
    $region6: #{resampler_forward.1} parent=1 // loop_footer
      %s22 = sadd.s32 1, %s18
    $region7: #{resampler_forward.1} parent=1 // loop_footer_branch
      %17 = sbr.rel target = $region3
    $region8: #{resampler_forward.1} parent=1 // loop_exit
      _
    %2168 = vsyncpa [#allocation6], 1
    %s2169 = scalar_lea.sflag [#allocation6], 1
    %2170 = vsyncpa %s2169, 1

</llo_original>
